<compile_context>
chip_gen: v7x
topology: tpu7x:2x2x1
jax: 0.10.0
libtpu: 0.0.40
codegen_flags: <defaults>
</compile_context>

<pallas_src>
import functools

import jax
import jax.numpy as jnp
import numpy as np
from jax.experimental import pallas as pl
from jax.experimental.pallas import tpu as pltpu


# ---------------------------------------------------------------------------
# Fused SpatialAttention kernel
# ---------------------------------------------------------------------------
def _spatial_attention_kernel(xp_ref, w_ref, o_ref, scr_ref, *, H, W, P):
    """One batch element per grid step.

    xp_ref : (1, C, H+2P, W+2P) VMEM  -- reflect-padded input features
    w_ref  : (2*K*K,)           SMEM  -- flattened conv weight (OIHW, O=1)
    o_ref  : (1, C, H, W)       VMEM  -- sa * feat
    scr_ref: (2, H+2P, W+2P)    VMEM  -- [channel-avg map, channel-max map]
    """
    K = 2 * P + 1

    xp = xp_ref[0]                                   # (C, Hp, Wp)
    # Channel pooling (VPU elementwise across the C planes).
    scr_ref[0] = jnp.mean(xp, axis=0)                # avg over channels
    scr_ref[1] = jnp.max(xp, axis=0)                 # max over channels

    # 7x7 conv (2 -> 1, no bias) as a weighted sum of shifted taps on the VPU.
    acc = jnp.zeros((H, W), jnp.float32)
    for c in range(2):                               # static unroll
        for dy in range(K):
            for dx in range(K):
                wv = w_ref[c * K * K + dy * K + dx]  # scalar from SMEM
                acc = acc + wv * scr_ref[c, dy:dy + H, dx:dx + W]

    sa = jax.nn.sigmoid(acc)                         # (H, W), EUP

    # Multiply the (unpadded) features by the attention map and store.
    center = xp_ref[0, :, P:P + H, P:P + W]          # (C, H, W)
    o_ref[0] = center * sa[None, :, :]


def spatial_attention(feat_nchw, weight_oihw, kernel_size=7):
    """feat: (N, C, H, W) f32, weight: (1, 2, k, k) f32 (PyTorch OIHW)."""
    assert kernel_size in (3, 7), "kernel size must be 3 or 7"
    P = 3 if kernel_size == 7 else 1

    N, C, H, W = feat_nchw.shape
    Hp, Wp = H + 2 * P, W + 2 * P

    # Reflect padding commutes with per-pixel channel mean/max, so pad the
    # input once here (cheap XLA op) and reduce inside the kernel.
    xp = jnp.pad(
        feat_nchw.astype(jnp.float32),
        ((0, 0), (0, 0), (P, P), (P, P)),
        mode="reflect",
    )
    w_flat = weight_oihw.reshape(-1).astype(jnp.float32)   # (2*k*k,)

    out = pl.pallas_call(
        functools.partial(_spatial_attention_kernel, H=H, W=W, P=P),
        out_shape=jax.ShapeDtypeStruct((N, C, H, W), jnp.float32),
        grid=(N,),
        in_specs=[
            pl.BlockSpec((1, C, Hp, Wp), lambda n: (n, 0, 0, 0)),
            pl.BlockSpec(memory_space=pltpu.MemorySpace.SMEM),
        ],
        out_specs=pl.BlockSpec((1, C, H, W), lambda n: (n, 0, 0, 0)),
        scratch_shapes=[pltpu.VMEM((2, Hp, Wp), jnp.float32)],
        compiler_params=pltpu.CompilerParams(
            dimension_semantics=("parallel",)),   # v7x: shard batch over 2 TCs
    )(xp, w_flat)
    return out


# ---------------------------------------------------------------------------
# Pure-JAX reference (mirrors the PyTorch module exactly)
# ---------------------------------------------------------------------------
def spatial_attention_ref(feat, weight, kernel_size=7):
    P = 3 if kernel_size == 7 else 1
    avg = jnp.mean(feat, axis=1, keepdims=True)
    mx = jnp.max(feat, axis=1, keepdims=True)
    x = jnp.concatenate([avg, mx], axis=1)                       # (N,2,H,W)
    xp = jnp.pad(x, ((0, 0), (0, 0), (P, P), (P, P)), mode="reflect")
    y = jax.lax.conv_general_dilated(
        xp, weight, window_strides=(1, 1), padding="VALID",
        dimension_numbers=("NCHW", "OIHW", "NCHW"))
    return jax.nn.sigmoid(y) * feat


# ---------------------------------------------------------------------------
if __name__ == "__main__":
    key = jax.random.PRNGKey(0)
    k_w, k_x = jax.random.split(key)

    N, C, H, W = 2, 8, 16, 16
    K = 7

    # Conv2d(2, 1, 7, bias=False) default init scale: 1/sqrt(fan_in).
    bound = 1.0 / np.sqrt(2 * K * K)
    weight = jax.random.uniform(k_w, (1, 2, K, K), jnp.float32, -bound, bound)

    x = jax.random.normal(k_x, (N, C, H, W), jnp.float32)

    fwd = jax.jit(spatial_attention)
    y = jax.block_until_ready(fwd(x, weight))

    y_ref = spatial_attention_ref(x, weight)

    assert y.shape == (N, C, H, W), y.shape
    assert bool(jnp.all(jnp.isfinite(y)))
    assert bool(jnp.allclose(y, y_ref, atol=1e-4, rtol=1e-4)), (
        float(jnp.max(jnp.abs(y - y_ref))))
    print("KERNEL_OK")
</pallas_src>

<mosaic_0001>
module attributes {stable_mosaic.version = 11 : i64} {
  func.func @_spatial_attention_kernel(%arg0: i32, %arg1: memref<1x8x22x22xf32, #tpu.memory_space<vmem>>, %arg2: memref<98xf32, #tpu.memory_space<smem>>, %arg3: memref<1x8x16x16xf32, #tpu.memory_space<vmem>>, %arg4: memref<2x22x22xf32, #tpu.memory_space<vmem>>) attributes {dimension_semantics = [#tpu.dimension_semantics<parallel>], iteration_bounds = array<i64: 2>, scalar_prefetch = 0 : i64, scratch_operands = 1 : i64, tpu.core_type = #tpu.core_type<tc>, window_params = [{transform_indices = @transform_0, window_bounds = array<i64: 1, 8, 22, 22>}, {transform_indices = @transform_1, window_bounds = array<i64: 98>}, {transform_indices = @transform_2, window_bounds = array<i64: 1, 8, 16, 16>}]} {
    %c0 = arith.constant 0 : index
    %c0_0 = arith.constant 0 : index
    %c0_1 = arith.constant 0 : index
    %c0_2 = arith.constant 0 : index
    %0 = vector.load %arg1[%c0, %c0_0, %c0_1, %c0_2] : memref<1x8x22x22xf32, #tpu.memory_space<vmem>>, vector<1x8x22x22xf32>
    %1 = vector.shape_cast %0 : vector<1x8x22x22xf32> to vector<8x22x22xf32>
    %cst = arith.constant dense<0.000000e+00> : vector<22x22xf32>
    %2 = vector.multi_reduction <add>, %1, %cst [0] : vector<8x22x22xf32> to vector<22x22xf32>
    %cst_3 = arith.constant 8.000000e+00 : f32
    %3 = vector.broadcast %cst_3 : f32 to vector<22x22xf32>
    %4 = arith.divf %2, %3 : vector<22x22xf32>
    %c0_4 = arith.constant 0 : index
    %c0_5 = arith.constant 0 : index
    %c0_6 = arith.constant 0 : index
    %5 = vector.load %arg4[%c0_4, %c0_5, %c0_6] : memref<2x22x22xf32, #tpu.memory_space<vmem>>, vector<1x22x22xf32>
    %6 = vector.shape_cast %5 : vector<1x22x22xf32> to vector<22x22xf32>
    %7 = vector.shape_cast %4 : vector<22x22xf32> to vector<1x22x22xf32>
    tpu.vector_store %arg4[%c0_4, %c0_5, %c0_6], %7 {strides = array<i32>} : memref<2x22x22xf32, #tpu.memory_space<vmem>>, vector<1x22x22xf32>,
    %cst_7 = arith.constant dense<0xFF800000> : vector<22x22xf32>
    %8 = vector.multi_reduction <maximumf>, %1, %cst_7 [0] : vector<8x22x22xf32> to vector<22x22xf32>
    %c1 = arith.constant 1 : index
    %c0_8 = arith.constant 0 : index
    %c0_9 = arith.constant 0 : index
    %9 = vector.load %arg4[%c1, %c0_8, %c0_9] : memref<2x22x22xf32, #tpu.memory_space<vmem>>, vector<1x22x22xf32>
    %10 = vector.shape_cast %9 : vector<1x22x22xf32> to vector<22x22xf32>
    %11 = vector.shape_cast %8 : vector<22x22xf32> to vector<1x22x22xf32>
    tpu.vector_store %arg4[%c1, %c0_8, %c0_9], %11 {strides = array<i32>} : memref<2x22x22xf32, #tpu.memory_space<vmem>>, vector<1x22x22xf32>,
    %cst_10 = arith.constant 0.000000e+00 : f32
    %12 = vector.broadcast %cst_10 : f32 to vector<16x16xf32>
    %c0_11 = arith.constant 0 : index
    %13 = memref.load %arg2[%c0_11] : memref<98xf32, #tpu.memory_space<smem>>
    %c0_12 = arith.constant 0 : index
    %c0_13 = arith.constant 0 : index
    %c0_14 = arith.constant 0 : index
    %14 = vector.load %arg4[%c0_12, %c0_13, %c0_14] : memref<2x22x22xf32, #tpu.memory_space<vmem>>, vector<1x16x16xf32>
    %15 = vector.shape_cast %14 : vector<1x16x16xf32> to vector<16x16xf32>
    %16 = vector.broadcast %13 : f32 to vector<16x16xf32>
    %17 = arith.mulf %16, %15 : vector<16x16xf32>
    %18 = arith.addf %12, %17 : vector<16x16xf32>
    %c1_15 = arith.constant 1 : index
    %19 = memref.load %arg2[%c1_15] : memref<98xf32, #tpu.memory_space<smem>>
    %c0_16 = arith.constant 0 : index
    %c0_17 = arith.constant 0 : index
    %c1_18 = arith.constant 1 : index
    %20 = vector.load %arg4[%c0_16, %c0_17, %c1_18] : memref<2x22x22xf32, #tpu.memory_space<vmem>>, vector<1x16x16xf32>
    %21 = vector.shape_cast %20 : vector<1x16x16xf32> to vector<16x16xf32>
    %22 = vector.broadcast %19 : f32 to vector<16x16xf32>
    %23 = arith.mulf %22, %21 : vector<16x16xf32>
    %24 = arith.addf %18, %23 : vector<16x16xf32>
    %c2 = arith.constant 2 : index
    %25 = memref.load %arg2[%c2] : memref<98xf32, #tpu.memory_space<smem>>
    %c0_19 = arith.constant 0 : index
    %c0_20 = arith.constant 0 : index
    %c2_21 = arith.constant 2 : index
    %26 = vector.load %arg4[%c0_19, %c0_20, %c2_21] : memref<2x22x22xf32, #tpu.memory_space<vmem>>, vector<1x16x16xf32>
    %27 = vector.shape_cast %26 : vector<1x16x16xf32> to vector<16x16xf32>
    %28 = vector.broadcast %25 : f32 to vector<16x16xf32>
    %29 = arith.mulf %28, %27 : vector<16x16xf32>
    %30 = arith.addf %24, %29 : vector<16x16xf32>
    %c3 = arith.constant 3 : index
    %31 = memref.load %arg2[%c3] : memref<98xf32, #tpu.memory_space<smem>>
    %c0_22 = arith.constant 0 : index
    %c0_23 = arith.constant 0 : index
    %c3_24 = arith.constant 3 : index
    %32 = vector.load %arg4[%c0_22, %c0_23, %c3_24] : memref<2x22x22xf32, #tpu.memory_space<vmem>>, vector<1x16x16xf32>
    %33 = vector.shape_cast %32 : vector<1x16x16xf32> to vector<16x16xf32>
    %34 = vector.broadcast %31 : f32 to vector<16x16xf32>
    %35 = arith.mulf %34, %33 : vector<16x16xf32>
    %36 = arith.addf %30, %35 : vector<16x16xf32>
    %c4 = arith.constant 4 : index
    %37 = memref.load %arg2[%c4] : memref<98xf32, #tpu.memory_space<smem>>
    %c0_25 = arith.constant 0 : index
    %c0_26 = arith.constant 0 : index
    %c4_27 = arith.constant 4 : index
    %38 = vector.load %arg4[%c0_25, %c0_26, %c4_27] : memref<2x22x22xf32, #tpu.memory_space<vmem>>, vector<1x16x16xf32>
    %39 = vector.shape_cast %38 : vector<1x16x16xf32> to vector<16x16xf32>
    %40 = vector.broadcast %37 : f32 to vector<16x16xf32>
    %41 = arith.mulf %40, %39 : vector<16x16xf32>
    %42 = arith.addf %36, %41 : vector<16x16xf32>
    %c5 = arith.constant 5 : index
    %43 = memref.load %arg2[%c5] : memref<98xf32, #tpu.memory_space<smem>>
    %c0_28 = arith.constant 0 : index
    %c0_29 = arith.constant 0 : index
    %c5_30 = arith.constant 5 : index
    %44 = vector.load %arg4[%c0_28, %c0_29, %c5_30] : memref<2x22x22xf32, #tpu.memory_space<vmem>>, vector<1x16x16xf32>
    %45 = vector.shape_cast %44 : vector<1x16x16xf32> to vector<16x16xf32>
    %46 = vector.broadcast %43 : f32 to vector<16x16xf32>
    %47 = arith.mulf %46, %45 : vector<16x16xf32>
    %48 = arith.addf %42, %47 : vector<16x16xf32>
    %c6 = arith.constant 6 : index
    %49 = memref.load %arg2[%c6] : memref<98xf32, #tpu.memory_space<smem>>
    %c0_31 = arith.constant 0 : index
    %c0_32 = arith.constant 0 : index
    %c6_33 = arith.constant 6 : index
    %50 = vector.load %arg4[%c0_31, %c0_32, %c6_33] : memref<2x22x22xf32, #tpu.memory_space<vmem>>, vector<1x16x16xf32>
    %51 = vector.shape_cast %50 : vector<1x16x16xf32> to vector<16x16xf32>
    %52 = vector.broadcast %49 : f32 to vector<16x16xf32>
    %53 = arith.mulf %52, %51 : vector<16x16xf32>
    %54 = arith.addf %48, %53 : vector<16x16xf32>
    %c7 = arith.constant 7 : index
    %55 = memref.load %arg2[%c7] : memref<98xf32, #tpu.memory_space<smem>>
    %c0_34 = arith.constant 0 : index
    %c1_35 = arith.constant 1 : index
    %c0_36 = arith.constant 0 : index
    %56 = vector.load %arg4[%c0_34, %c1_35, %c0_36] : memref<2x22x22xf32, #tpu.memory_space<vmem>>, vector<1x16x16xf32>
    %57 = vector.shape_cast %56 : vector<1x16x16xf32> to vector<16x16xf32>
    %58 = vector.broadcast %55 : f32 to vector<16x16xf32>
    %59 = arith.mulf %58, %57 : vector<16x16xf32>
    %60 = arith.addf %54, %59 : vector<16x16xf32>
    %c8 = arith.constant 8 : index
    %61 = memref.load %arg2[%c8] : memref<98xf32, #tpu.memory_space<smem>>
    %c0_37 = arith.constant 0 : index
    %c1_38 = arith.constant 1 : index
    %c1_39 = arith.constant 1 : index
    %62 = vector.load %arg4[%c0_37, %c1_38, %c1_39] : memref<2x22x22xf32, #tpu.memory_space<vmem>>, vector<1x16x16xf32>
    %63 = vector.shape_cast %62 : vector<1x16x16xf32> to vector<16x16xf32>
    %64 = vector.broadcast %61 : f32 to vector<16x16xf32>
    %65 = arith.mulf %64, %63 : vector<16x16xf32>
    %66 = arith.addf %60, %65 : vector<16x16xf32>
    %c9 = arith.constant 9 : index
    %67 = memref.load %arg2[%c9] : memref<98xf32, #tpu.memory_space<smem>>
    %c0_40 = arith.constant 0 : index
    %c1_41 = arith.constant 1 : index
    %c2_42 = arith.constant 2 : index
    %68 = vector.load %arg4[%c0_40, %c1_41, %c2_42] : memref<2x22x22xf32, #tpu.memory_space<vmem>>, vector<1x16x16xf32>
    %69 = vector.shape_cast %68 : vector<1x16x16xf32> to vector<16x16xf32>
    %70 = vector.broadcast %67 : f32 to vector<16x16xf32>
    %71 = arith.mulf %70, %69 : vector<16x16xf32>
    %72 = arith.addf %66, %71 : vector<16x16xf32>
    %c10 = arith.constant 10 : index
    %73 = memref.load %arg2[%c10] : memref<98xf32, #tpu.memory_space<smem>>
    %c0_43 = arith.constant 0 : index
    %c1_44 = arith.constant 1 : index
    %c3_45 = arith.constant 3 : index
    %74 = vector.load %arg4[%c0_43, %c1_44, %c3_45] : memref<2x22x22xf32, #tpu.memory_space<vmem>>, vector<1x16x16xf32>
    %75 = vector.shape_cast %74 : vector<1x16x16xf32> to vector<16x16xf32>
    %76 = vector.broadcast %73 : f32 to vector<16x16xf32>
    %77 = arith.mulf %76, %75 : vector<16x16xf32>
    %78 = arith.addf %72, %77 : vector<16x16xf32>
    %c11 = arith.constant 11 : index
    %79 = memref.load %arg2[%c11] : memref<98xf32, #tpu.memory_space<smem>>
    %c0_46 = arith.constant 0 : index
    %c1_47 = arith.constant 1 : index
    %c4_48 = arith.constant 4 : index
    %80 = vector.load %arg4[%c0_46, %c1_47, %c4_48] : memref<2x22x22xf32, #tpu.memory_space<vmem>>, vector<1x16x16xf32>
    %81 = vector.shape_cast %80 : vector<1x16x16xf32> to vector<16x16xf32>
    %82 = vector.broadcast %79 : f32 to vector<16x16xf32>
    %83 = arith.mulf %82, %81 : vector<16x16xf32>
    %84 = arith.addf %78, %83 : vector<16x16xf32>
    %c12 = arith.constant 12 : index
    %85 = memref.load %arg2[%c12] : memref<98xf32, #tpu.memory_space<smem>>
    %c0_49 = arith.constant 0 : index
    %c1_50 = arith.constant 1 : index
    %c5_51 = arith.constant 5 : index
    %86 = vector.load %arg4[%c0_49, %c1_50, %c5_51] : memref<2x22x22xf32, #tpu.memory_space<vmem>>, vector<1x16x16xf32>
    %87 = vector.shape_cast %86 : vector<1x16x16xf32> to vector<16x16xf32>
    %88 = vector.broadcast %85 : f32 to vector<16x16xf32>
    %89 = arith.mulf %88, %87 : vector<16x16xf32>
    %90 = arith.addf %84, %89 : vector<16x16xf32>
    %c13 = arith.constant 13 : index
    %91 = memref.load %arg2[%c13] : memref<98xf32, #tpu.memory_space<smem>>
    %c0_52 = arith.constant 0 : index
    %c1_53 = arith.constant 1 : index
    %c6_54 = arith.constant 6 : index
    %92 = vector.load %arg4[%c0_52, %c1_53, %c6_54] : memref<2x22x22xf32, #tpu.memory_space<vmem>>, vector<1x16x16xf32>
    %93 = vector.shape_cast %92 : vector<1x16x16xf32> to vector<16x16xf32>
    %94 = vector.broadcast %91 : f32 to vector<16x16xf32>
    %95 = arith.mulf %94, %93 : vector<16x16xf32>
    %96 = arith.addf %90, %95 : vector<16x16xf32>
    %c14 = arith.constant 14 : index
    %97 = memref.load %arg2[%c14] : memref<98xf32, #tpu.memory_space<smem>>
    %c0_55 = arith.constant 0 : index
    %c2_56 = arith.constant 2 : index
    %c0_57 = arith.constant 0 : index
    %98 = vector.load %arg4[%c0_55, %c2_56, %c0_57] : memref<2x22x22xf32, #tpu.memory_space<vmem>>, vector<1x16x16xf32>
    %99 = vector.shape_cast %98 : vector<1x16x16xf32> to vector<16x16xf32>
    %100 = vector.broadcast %97 : f32 to vector<16x16xf32>
    %101 = arith.mulf %100, %99 : vector<16x16xf32>
    %102 = arith.addf %96, %101 : vector<16x16xf32>
    %c15 = arith.constant 15 : index
    %103 = memref.load %arg2[%c15] : memref<98xf32, #tpu.memory_space<smem>>
    %c0_58 = arith.constant 0 : index
    %c2_59 = arith.constant 2 : index
    %c1_60 = arith.constant 1 : index
    %104 = vector.load %arg4[%c0_58, %c2_59, %c1_60] : memref<2x22x22xf32, #tpu.memory_space<vmem>>, vector<1x16x16xf32>
    %105 = vector.shape_cast %104 : vector<1x16x16xf32> to vector<16x16xf32>
    %106 = vector.broadcast %103 : f32 to vector<16x16xf32>
    %107 = arith.mulf %106, %105 : vector<16x16xf32>
    %108 = arith.addf %102, %107 : vector<16x16xf32>
    %c16 = arith.constant 16 : index
    %109 = memref.load %arg2[%c16] : memref<98xf32, #tpu.memory_space<smem>>
    %c0_61 = arith.constant 0 : index
    %c2_62 = arith.constant 2 : index
    %c2_63 = arith.constant 2 : index
    %110 = vector.load %arg4[%c0_61, %c2_62, %c2_63] : memref<2x22x22xf32, #tpu.memory_space<vmem>>, vector<1x16x16xf32>
    %111 = vector.shape_cast %110 : vector<1x16x16xf32> to vector<16x16xf32>
    %112 = vector.broadcast %109 : f32 to vector<16x16xf32>
    %113 = arith.mulf %112, %111 : vector<16x16xf32>
    %114 = arith.addf %108, %113 : vector<16x16xf32>
    %c17 = arith.constant 17 : index
    %115 = memref.load %arg2[%c17] : memref<98xf32, #tpu.memory_space<smem>>
    %c0_64 = arith.constant 0 : index
    %c2_65 = arith.constant 2 : index
    %c3_66 = arith.constant 3 : index
    %116 = vector.load %arg4[%c0_64, %c2_65, %c3_66] : memref<2x22x22xf32, #tpu.memory_space<vmem>>, vector<1x16x16xf32>
    %117 = vector.shape_cast %116 : vector<1x16x16xf32> to vector<16x16xf32>
    %118 = vector.broadcast %115 : f32 to vector<16x16xf32>
    %119 = arith.mulf %118, %117 : vector<16x16xf32>
    %120 = arith.addf %114, %119 : vector<16x16xf32>
    %c18 = arith.constant 18 : index
    %121 = memref.load %arg2[%c18] : memref<98xf32, #tpu.memory_space<smem>>
    %c0_67 = arith.constant 0 : index
    %c2_68 = arith.constant 2 : index
    %c4_69 = arith.constant 4 : index
    %122 = vector.load %arg4[%c0_67, %c2_68, %c4_69] : memref<2x22x22xf32, #tpu.memory_space<vmem>>, vector<1x16x16xf32>
    %123 = vector.shape_cast %122 : vector<1x16x16xf32> to vector<16x16xf32>
    %124 = vector.broadcast %121 : f32 to vector<16x16xf32>
    %125 = arith.mulf %124, %123 : vector<16x16xf32>
    %126 = arith.addf %120, %125 : vector<16x16xf32>
    %c19 = arith.constant 19 : index
    %127 = memref.load %arg2[%c19] : memref<98xf32, #tpu.memory_space<smem>>
    %c0_70 = arith.constant 0 : index
    %c2_71 = arith.constant 2 : index
    %c5_72 = arith.constant 5 : index
    %128 = vector.load %arg4[%c0_70, %c2_71, %c5_72] : memref<2x22x22xf32, #tpu.memory_space<vmem>>, vector<1x16x16xf32>
    %129 = vector.shape_cast %128 : vector<1x16x16xf32> to vector<16x16xf32>
    %130 = vector.broadcast %127 : f32 to vector<16x16xf32>
    %131 = arith.mulf %130, %129 : vector<16x16xf32>
    %132 = arith.addf %126, %131 : vector<16x16xf32>
    %c20 = arith.constant 20 : index
    %133 = memref.load %arg2[%c20] : memref<98xf32, #tpu.memory_space<smem>>
    %c0_73 = arith.constant 0 : index
    %c2_74 = arith.constant 2 : index
    %c6_75 = arith.constant 6 : index
    %134 = vector.load %arg4[%c0_73, %c2_74, %c6_75] : memref<2x22x22xf32, #tpu.memory_space<vmem>>, vector<1x16x16xf32>
    %135 = vector.shape_cast %134 : vector<1x16x16xf32> to vector<16x16xf32>
    %136 = vector.broadcast %133 : f32 to vector<16x16xf32>
    %137 = arith.mulf %136, %135 : vector<16x16xf32>
    %138 = arith.addf %132, %137 : vector<16x16xf32>
    %c21 = arith.constant 21 : index
    %139 = memref.load %arg2[%c21] : memref<98xf32, #tpu.memory_space<smem>>
    %c0_76 = arith.constant 0 : index
    %c3_77 = arith.constant 3 : index
    %c0_78 = arith.constant 0 : index
    %140 = vector.load %arg4[%c0_76, %c3_77, %c0_78] : memref<2x22x22xf32, #tpu.memory_space<vmem>>, vector<1x16x16xf32>
    %141 = vector.shape_cast %140 : vector<1x16x16xf32> to vector<16x16xf32>
    %142 = vector.broadcast %139 : f32 to vector<16x16xf32>
    %143 = arith.mulf %142, %141 : vector<16x16xf32>
    %144 = arith.addf %138, %143 : vector<16x16xf32>
    %c22 = arith.constant 22 : index
    %145 = memref.load %arg2[%c22] : memref<98xf32, #tpu.memory_space<smem>>
    %c0_79 = arith.constant 0 : index
    %c3_80 = arith.constant 3 : index
    %c1_81 = arith.constant 1 : index
    %146 = vector.load %arg4[%c0_79, %c3_80, %c1_81] : memref<2x22x22xf32, #tpu.memory_space<vmem>>, vector<1x16x16xf32>
    %147 = vector.shape_cast %146 : vector<1x16x16xf32> to vector<16x16xf32>
    %148 = vector.broadcast %145 : f32 to vector<16x16xf32>
    %149 = arith.mulf %148, %147 : vector<16x16xf32>
    %150 = arith.addf %144, %149 : vector<16x16xf32>
    %c23 = arith.constant 23 : index
    %151 = memref.load %arg2[%c23] : memref<98xf32, #tpu.memory_space<smem>>
    %c0_82 = arith.constant 0 : index
    %c3_83 = arith.constant 3 : index
    %c2_84 = arith.constant 2 : index
    %152 = vector.load %arg4[%c0_82, %c3_83, %c2_84] : memref<2x22x22xf32, #tpu.memory_space<vmem>>, vector<1x16x16xf32>
    %153 = vector.shape_cast %152 : vector<1x16x16xf32> to vector<16x16xf32>
    %154 = vector.broadcast %151 : f32 to vector<16x16xf32>
    %155 = arith.mulf %154, %153 : vector<16x16xf32>
    %156 = arith.addf %150, %155 : vector<16x16xf32>
    %c24 = arith.constant 24 : index
    %157 = memref.load %arg2[%c24] : memref<98xf32, #tpu.memory_space<smem>>
    %c0_85 = arith.constant 0 : index
    %c3_86 = arith.constant 3 : index
    %c3_87 = arith.constant 3 : index
    %158 = vector.load %arg4[%c0_85, %c3_86, %c3_87] : memref<2x22x22xf32, #tpu.memory_space<vmem>>, vector<1x16x16xf32>
    %159 = vector.shape_cast %158 : vector<1x16x16xf32> to vector<16x16xf32>
    %160 = vector.broadcast %157 : f32 to vector<16x16xf32>
    %161 = arith.mulf %160, %159 : vector<16x16xf32>
    %162 = arith.addf %156, %161 : vector<16x16xf32>
    %c25 = arith.constant 25 : index
    %163 = memref.load %arg2[%c25] : memref<98xf32, #tpu.memory_space<smem>>
    %c0_88 = arith.constant 0 : index
    %c3_89 = arith.constant 3 : index
    %c4_90 = arith.constant 4 : index
    %164 = vector.load %arg4[%c0_88, %c3_89, %c4_90] : memref<2x22x22xf32, #tpu.memory_space<vmem>>, vector<1x16x16xf32>
    %165 = vector.shape_cast %164 : vector<1x16x16xf32> to vector<16x16xf32>
    %166 = vector.broadcast %163 : f32 to vector<16x16xf32>
    %167 = arith.mulf %166, %165 : vector<16x16xf32>
    %168 = arith.addf %162, %167 : vector<16x16xf32>
    %c26 = arith.constant 26 : index
    %169 = memref.load %arg2[%c26] : memref<98xf32, #tpu.memory_space<smem>>
    %c0_91 = arith.constant 0 : index
    %c3_92 = arith.constant 3 : index
    %c5_93 = arith.constant 5 : index
    %170 = vector.load %arg4[%c0_91, %c3_92, %c5_93] : memref<2x22x22xf32, #tpu.memory_space<vmem>>, vector<1x16x16xf32>
    %171 = vector.shape_cast %170 : vector<1x16x16xf32> to vector<16x16xf32>
    %172 = vector.broadcast %169 : f32 to vector<16x16xf32>
    %173 = arith.mulf %172, %171 : vector<16x16xf32>
    %174 = arith.addf %168, %173 : vector<16x16xf32>
    %c27 = arith.constant 27 : index
    %175 = memref.load %arg2[%c27] : memref<98xf32, #tpu.memory_space<smem>>
    %c0_94 = arith.constant 0 : index
    %c3_95 = arith.constant 3 : index
    %c6_96 = arith.constant 6 : index
    %176 = vector.load %arg4[%c0_94, %c3_95, %c6_96] : memref<2x22x22xf32, #tpu.memory_space<vmem>>, vector<1x16x16xf32>
    %177 = vector.shape_cast %176 : vector<1x16x16xf32> to vector<16x16xf32>
    %178 = vector.broadcast %175 : f32 to vector<16x16xf32>
    %179 = arith.mulf %178, %177 : vector<16x16xf32>
    %180 = arith.addf %174, %179 : vector<16x16xf32>
    %c28 = arith.constant 28 : index
    %181 = memref.load %arg2[%c28] : memref<98xf32, #tpu.memory_space<smem>>
    %c0_97 = arith.constant 0 : index
    %c4_98 = arith.constant 4 : index
    %c0_99 = arith.constant 0 : index
    %182 = vector.load %arg4[%c0_97, %c4_98, %c0_99] : memref<2x22x22xf32, #tpu.memory_space<vmem>>, vector<1x16x16xf32>
    %183 = vector.shape_cast %182 : vector<1x16x16xf32> to vector<16x16xf32>
    %184 = vector.broadcast %181 : f32 to vector<16x16xf32>
    %185 = arith.mulf %184, %183 : vector<16x16xf32>
    %186 = arith.addf %180, %185 : vector<16x16xf32>
    %c29 = arith.constant 29 : index
    %187 = memref.load %arg2[%c29] : memref<98xf32, #tpu.memory_space<smem>>
    %c0_100 = arith.constant 0 : index
    %c4_101 = arith.constant 4 : index
    %c1_102 = arith.constant 1 : index
    %188 = vector.load %arg4[%c0_100, %c4_101, %c1_102] : memref<2x22x22xf32, #tpu.memory_space<vmem>>, vector<1x16x16xf32>
    %189 = vector.shape_cast %188 : vector<1x16x16xf32> to vector<16x16xf32>
    %190 = vector.broadcast %187 : f32 to vector<16x16xf32>
    %191 = arith.mulf %190, %189 : vector<16x16xf32>
    %192 = arith.addf %186, %191 : vector<16x16xf32>
    %c30 = arith.constant 30 : index
    %193 = memref.load %arg2[%c30] : memref<98xf32, #tpu.memory_space<smem>>
    %c0_103 = arith.constant 0 : index
    %c4_104 = arith.constant 4 : index
    %c2_105 = arith.constant 2 : index
    %194 = vector.load %arg4[%c0_103, %c4_104, %c2_105] : memref<2x22x22xf32, #tpu.memory_space<vmem>>, vector<1x16x16xf32>
    %195 = vector.shape_cast %194 : vector<1x16x16xf32> to vector<16x16xf32>
    %196 = vector.broadcast %193 : f32 to vector<16x16xf32>
    %197 = arith.mulf %196, %195 : vector<16x16xf32>
    %198 = arith.addf %192, %197 : vector<16x16xf32>
    %c31 = arith.constant 31 : index
    %199 = memref.load %arg2[%c31] : memref<98xf32, #tpu.memory_space<smem>>
    %c0_106 = arith.constant 0 : index
    %c4_107 = arith.constant 4 : index
    %c3_108 = arith.constant 3 : index
    %200 = vector.load %arg4[%c0_106, %c4_107, %c3_108] : memref<2x22x22xf32, #tpu.memory_space<vmem>>, vector<1x16x16xf32>
    %201 = vector.shape_cast %200 : vector<1x16x16xf32> to vector<16x16xf32>
    %202 = vector.broadcast %199 : f32 to vector<16x16xf32>
    %203 = arith.mulf %202, %201 : vector<16x16xf32>
    %204 = arith.addf %198, %203 : vector<16x16xf32>
    %c32 = arith.constant 32 : index
    %205 = memref.load %arg2[%c32] : memref<98xf32, #tpu.memory_space<smem>>
    %c0_109 = arith.constant 0 : index
    %c4_110 = arith.constant 4 : index
    %c4_111 = arith.constant 4 : index
    %206 = vector.load %arg4[%c0_109, %c4_110, %c4_111] : memref<2x22x22xf32, #tpu.memory_space<vmem>>, vector<1x16x16xf32>
    %207 = vector.shape_cast %206 : vector<1x16x16xf32> to vector<16x16xf32>
    %208 = vector.broadcast %205 : f32 to vector<16x16xf32>
    %209 = arith.mulf %208, %207 : vector<16x16xf32>
    %210 = arith.addf %204, %209 : vector<16x16xf32>
    %c33 = arith.constant 33 : index
    %211 = memref.load %arg2[%c33] : memref<98xf32, #tpu.memory_space<smem>>
    %c0_112 = arith.constant 0 : index
    %c4_113 = arith.constant 4 : index
    %c5_114 = arith.constant 5 : index
    %212 = vector.load %arg4[%c0_112, %c4_113, %c5_114] : memref<2x22x22xf32, #tpu.memory_space<vmem>>, vector<1x16x16xf32>
    %213 = vector.shape_cast %212 : vector<1x16x16xf32> to vector<16x16xf32>
    %214 = vector.broadcast %211 : f32 to vector<16x16xf32>
    %215 = arith.mulf %214, %213 : vector<16x16xf32>
    %216 = arith.addf %210, %215 : vector<16x16xf32>
    %c34 = arith.constant 34 : index
    %217 = memref.load %arg2[%c34] : memref<98xf32, #tpu.memory_space<smem>>
    %c0_115 = arith.constant 0 : index
    %c4_116 = arith.constant 4 : index
    %c6_117 = arith.constant 6 : index
    %218 = vector.load %arg4[%c0_115, %c4_116, %c6_117] : memref<2x22x22xf32, #tpu.memory_space<vmem>>, vector<1x16x16xf32>
    %219 = vector.shape_cast %218 : vector<1x16x16xf32> to vector<16x16xf32>
    %220 = vector.broadcast %217 : f32 to vector<16x16xf32>
    %221 = arith.mulf %220, %219 : vector<16x16xf32>
    %222 = arith.addf %216, %221 : vector<16x16xf32>
    %c35 = arith.constant 35 : index
    %223 = memref.load %arg2[%c35] : memref<98xf32, #tpu.memory_space<smem>>
    %c0_118 = arith.constant 0 : index
    %c5_119 = arith.constant 5 : index
    %c0_120 = arith.constant 0 : index
    %224 = vector.load %arg4[%c0_118, %c5_119, %c0_120] : memref<2x22x22xf32, #tpu.memory_space<vmem>>, vector<1x16x16xf32>
    %225 = vector.shape_cast %224 : vector<1x16x16xf32> to vector<16x16xf32>
    %226 = vector.broadcast %223 : f32 to vector<16x16xf32>
    %227 = arith.mulf %226, %225 : vector<16x16xf32>
    %228 = arith.addf %222, %227 : vector<16x16xf32>
    %c36 = arith.constant 36 : index
    %229 = memref.load %arg2[%c36] : memref<98xf32, #tpu.memory_space<smem>>
    %c0_121 = arith.constant 0 : index
    %c5_122 = arith.constant 5 : index
    %c1_123 = arith.constant 1 : index
    %230 = vector.load %arg4[%c0_121, %c5_122, %c1_123] : memref<2x22x22xf32, #tpu.memory_space<vmem>>, vector<1x16x16xf32>
    %231 = vector.shape_cast %230 : vector<1x16x16xf32> to vector<16x16xf32>
    %232 = vector.broadcast %229 : f32 to vector<16x16xf32>
    %233 = arith.mulf %232, %231 : vector<16x16xf32>
    %234 = arith.addf %228, %233 : vector<16x16xf32>
    %c37 = arith.constant 37 : index
    %235 = memref.load %arg2[%c37] : memref<98xf32, #tpu.memory_space<smem>>
    %c0_124 = arith.constant 0 : index
    %c5_125 = arith.constant 5 : index
    %c2_126 = arith.constant 2 : index
    %236 = vector.load %arg4[%c0_124, %c5_125, %c2_126] : memref<2x22x22xf32, #tpu.memory_space<vmem>>, vector<1x16x16xf32>
    %237 = vector.shape_cast %236 : vector<1x16x16xf32> to vector<16x16xf32>
    %238 = vector.broadcast %235 : f32 to vector<16x16xf32>
    %239 = arith.mulf %238, %237 : vector<16x16xf32>
    %240 = arith.addf %234, %239 : vector<16x16xf32>
    %c38 = arith.constant 38 : index
    %241 = memref.load %arg2[%c38] : memref<98xf32, #tpu.memory_space<smem>>
    %c0_127 = arith.constant 0 : index
    %c5_128 = arith.constant 5 : index
    %c3_129 = arith.constant 3 : index
    %242 = vector.load %arg4[%c0_127, %c5_128, %c3_129] : memref<2x22x22xf32, #tpu.memory_space<vmem>>, vector<1x16x16xf32>
    %243 = vector.shape_cast %242 : vector<1x16x16xf32> to vector<16x16xf32>
    %244 = vector.broadcast %241 : f32 to vector<16x16xf32>
    %245 = arith.mulf %244, %243 : vector<16x16xf32>
    %246 = arith.addf %240, %245 : vector<16x16xf32>
    %c39 = arith.constant 39 : index
    %247 = memref.load %arg2[%c39] : memref<98xf32, #tpu.memory_space<smem>>
    %c0_130 = arith.constant 0 : index
    %c5_131 = arith.constant 5 : index
    %c4_132 = arith.constant 4 : index
    %248 = vector.load %arg4[%c0_130, %c5_131, %c4_132] : memref<2x22x22xf32, #tpu.memory_space<vmem>>, vector<1x16x16xf32>
    %249 = vector.shape_cast %248 : vector<1x16x16xf32> to vector<16x16xf32>
    %250 = vector.broadcast %247 : f32 to vector<16x16xf32>
    %251 = arith.mulf %250, %249 : vector<16x16xf32>
    %252 = arith.addf %246, %251 : vector<16x16xf32>
    %c40 = arith.constant 40 : index
    %253 = memref.load %arg2[%c40] : memref<98xf32, #tpu.memory_space<smem>>
    %c0_133 = arith.constant 0 : index
    %c5_134 = arith.constant 5 : index
    %c5_135 = arith.constant 5 : index
    %254 = vector.load %arg4[%c0_133, %c5_134, %c5_135] : memref<2x22x22xf32, #tpu.memory_space<vmem>>, vector<1x16x16xf32>
    %255 = vector.shape_cast %254 : vector<1x16x16xf32> to vector<16x16xf32>
    %256 = vector.broadcast %253 : f32 to vector<16x16xf32>
    %257 = arith.mulf %256, %255 : vector<16x16xf32>
    %258 = arith.addf %252, %257 : vector<16x16xf32>
    %c41 = arith.constant 41 : index
    %259 = memref.load %arg2[%c41] : memref<98xf32, #tpu.memory_space<smem>>
    %c0_136 = arith.constant 0 : index
    %c5_137 = arith.constant 5 : index
    %c6_138 = arith.constant 6 : index
    %260 = vector.load %arg4[%c0_136, %c5_137, %c6_138] : memref<2x22x22xf32, #tpu.memory_space<vmem>>, vector<1x16x16xf32>
    %261 = vector.shape_cast %260 : vector<1x16x16xf32> to vector<16x16xf32>
    %262 = vector.broadcast %259 : f32 to vector<16x16xf32>
    %263 = arith.mulf %262, %261 : vector<16x16xf32>
    %264 = arith.addf %258, %263 : vector<16x16xf32>
    %c42 = arith.constant 42 : index
    %265 = memref.load %arg2[%c42] : memref<98xf32, #tpu.memory_space<smem>>
    %c0_139 = arith.constant 0 : index
    %c6_140 = arith.constant 6 : index
    %c0_141 = arith.constant 0 : index
    %266 = vector.load %arg4[%c0_139, %c6_140, %c0_141] : memref<2x22x22xf32, #tpu.memory_space<vmem>>, vector<1x16x16xf32>
    %267 = vector.shape_cast %266 : vector<1x16x16xf32> to vector<16x16xf32>
    %268 = vector.broadcast %265 : f32 to vector<16x16xf32>
    %269 = arith.mulf %268, %267 : vector<16x16xf32>
    %270 = arith.addf %264, %269 : vector<16x16xf32>
    %c43 = arith.constant 43 : index
    %271 = memref.load %arg2[%c43] : memref<98xf32, #tpu.memory_space<smem>>
    %c0_142 = arith.constant 0 : index
    %c6_143 = arith.constant 6 : index
    %c1_144 = arith.constant 1 : index
    %272 = vector.load %arg4[%c0_142, %c6_143, %c1_144] : memref<2x22x22xf32, #tpu.memory_space<vmem>>, vector<1x16x16xf32>
    %273 = vector.shape_cast %272 : vector<1x16x16xf32> to vector<16x16xf32>
    %274 = vector.broadcast %271 : f32 to vector<16x16xf32>
    %275 = arith.mulf %274, %273 : vector<16x16xf32>
    %276 = arith.addf %270, %275 : vector<16x16xf32>
    %c44 = arith.constant 44 : index
    %277 = memref.load %arg2[%c44] : memref<98xf32, #tpu.memory_space<smem>>
    %c0_145 = arith.constant 0 : index
    %c6_146 = arith.constant 6 : index
    %c2_147 = arith.constant 2 : index
    %278 = vector.load %arg4[%c0_145, %c6_146, %c2_147] : memref<2x22x22xf32, #tpu.memory_space<vmem>>, vector<1x16x16xf32>
    %279 = vector.shape_cast %278 : vector<1x16x16xf32> to vector<16x16xf32>
    %280 = vector.broadcast %277 : f32 to vector<16x16xf32>
    %281 = arith.mulf %280, %279 : vector<16x16xf32>
    %282 = arith.addf %276, %281 : vector<16x16xf32>
    %c45 = arith.constant 45 : index
    %283 = memref.load %arg2[%c45] : memref<98xf32, #tpu.memory_space<smem>>
    %c0_148 = arith.constant 0 : index
    %c6_149 = arith.constant 6 : index
    %c3_150 = arith.constant 3 : index
    %284 = vector.load %arg4[%c0_148, %c6_149, %c3_150] : memref<2x22x22xf32, #tpu.memory_space<vmem>>, vector<1x16x16xf32>
    %285 = vector.shape_cast %284 : vector<1x16x16xf32> to vector<16x16xf32>
    %286 = vector.broadcast %283 : f32 to vector<16x16xf32>
    %287 = arith.mulf %286, %285 : vector<16x16xf32>
    %288 = arith.addf %282, %287 : vector<16x16xf32>
    %c46 = arith.constant 46 : index
    %289 = memref.load %arg2[%c46] : memref<98xf32, #tpu.memory_space<smem>>
    %c0_151 = arith.constant 0 : index
    %c6_152 = arith.constant 6 : index
    %c4_153 = arith.constant 4 : index
    %290 = vector.load %arg4[%c0_151, %c6_152, %c4_153] : memref<2x22x22xf32, #tpu.memory_space<vmem>>, vector<1x16x16xf32>
    %291 = vector.shape_cast %290 : vector<1x16x16xf32> to vector<16x16xf32>
    %292 = vector.broadcast %289 : f32 to vector<16x16xf32>
    %293 = arith.mulf %292, %291 : vector<16x16xf32>
    %294 = arith.addf %288, %293 : vector<16x16xf32>
    %c47 = arith.constant 47 : index
    %295 = memref.load %arg2[%c47] : memref<98xf32, #tpu.memory_space<smem>>
    %c0_154 = arith.constant 0 : index
    %c6_155 = arith.constant 6 : index
    %c5_156 = arith.constant 5 : index
    %296 = vector.load %arg4[%c0_154, %c6_155, %c5_156] : memref<2x22x22xf32, #tpu.memory_space<vmem>>, vector<1x16x16xf32>
    %297 = vector.shape_cast %296 : vector<1x16x16xf32> to vector<16x16xf32>
    %298 = vector.broadcast %295 : f32 to vector<16x16xf32>
    %299 = arith.mulf %298, %297 : vector<16x16xf32>
    %300 = arith.addf %294, %299 : vector<16x16xf32>
    %c48 = arith.constant 48 : index
    %301 = memref.load %arg2[%c48] : memref<98xf32, #tpu.memory_space<smem>>
    %c0_157 = arith.constant 0 : index
    %c6_158 = arith.constant 6 : index
    %c6_159 = arith.constant 6 : index
    %302 = vector.load %arg4[%c0_157, %c6_158, %c6_159] : memref<2x22x22xf32, #tpu.memory_space<vmem>>, vector<1x16x16xf32>
    %303 = vector.shape_cast %302 : vector<1x16x16xf32> to vector<16x16xf32>
    %304 = vector.broadcast %301 : f32 to vector<16x16xf32>
    %305 = arith.mulf %304, %303 : vector<16x16xf32>
    %306 = arith.addf %300, %305 : vector<16x16xf32>
    %c49 = arith.constant 49 : index
    %307 = memref.load %arg2[%c49] : memref<98xf32, #tpu.memory_space<smem>>
    %c1_160 = arith.constant 1 : index
    %c0_161 = arith.constant 0 : index
    %c0_162 = arith.constant 0 : index
    %308 = vector.load %arg4[%c1_160, %c0_161, %c0_162] : memref<2x22x22xf32, #tpu.memory_space<vmem>>, vector<1x16x16xf32>
    %309 = vector.shape_cast %308 : vector<1x16x16xf32> to vector<16x16xf32>
    %310 = vector.broadcast %307 : f32 to vector<16x16xf32>
    %311 = arith.mulf %310, %309 : vector<16x16xf32>
    %312 = arith.addf %306, %311 : vector<16x16xf32>
    %c50 = arith.constant 50 : index
    %313 = memref.load %arg2[%c50] : memref<98xf32, #tpu.memory_space<smem>>
    %c1_163 = arith.constant 1 : index
    %c0_164 = arith.constant 0 : index
    %c1_165 = arith.constant 1 : index
    %314 = vector.load %arg4[%c1_163, %c0_164, %c1_165] : memref<2x22x22xf32, #tpu.memory_space<vmem>>, vector<1x16x16xf32>
    %315 = vector.shape_cast %314 : vector<1x16x16xf32> to vector<16x16xf32>
    %316 = vector.broadcast %313 : f32 to vector<16x16xf32>
    %317 = arith.mulf %316, %315 : vector<16x16xf32>
    %318 = arith.addf %312, %317 : vector<16x16xf32>
    %c51 = arith.constant 51 : index
    %319 = memref.load %arg2[%c51] : memref<98xf32, #tpu.memory_space<smem>>
    %c1_166 = arith.constant 1 : index
    %c0_167 = arith.constant 0 : index
    %c2_168 = arith.constant 2 : index
    %320 = vector.load %arg4[%c1_166, %c0_167, %c2_168] : memref<2x22x22xf32, #tpu.memory_space<vmem>>, vector<1x16x16xf32>
    %321 = vector.shape_cast %320 : vector<1x16x16xf32> to vector<16x16xf32>
    %322 = vector.broadcast %319 : f32 to vector<16x16xf32>
    %323 = arith.mulf %322, %321 : vector<16x16xf32>
    %324 = arith.addf %318, %323 : vector<16x16xf32>
    %c52 = arith.constant 52 : index
    %325 = memref.load %arg2[%c52] : memref<98xf32, #tpu.memory_space<smem>>
    %c1_169 = arith.constant 1 : index
    %c0_170 = arith.constant 0 : index
    %c3_171 = arith.constant 3 : index
    %326 = vector.load %arg4[%c1_169, %c0_170, %c3_171] : memref<2x22x22xf32, #tpu.memory_space<vmem>>, vector<1x16x16xf32>
    %327 = vector.shape_cast %326 : vector<1x16x16xf32> to vector<16x16xf32>
    %328 = vector.broadcast %325 : f32 to vector<16x16xf32>
    %329 = arith.mulf %328, %327 : vector<16x16xf32>
    %330 = arith.addf %324, %329 : vector<16x16xf32>
    %c53 = arith.constant 53 : index
    %331 = memref.load %arg2[%c53] : memref<98xf32, #tpu.memory_space<smem>>
    %c1_172 = arith.constant 1 : index
    %c0_173 = arith.constant 0 : index
    %c4_174 = arith.constant 4 : index
    %332 = vector.load %arg4[%c1_172, %c0_173, %c4_174] : memref<2x22x22xf32, #tpu.memory_space<vmem>>, vector<1x16x16xf32>
    %333 = vector.shape_cast %332 : vector<1x16x16xf32> to vector<16x16xf32>
    %334 = vector.broadcast %331 : f32 to vector<16x16xf32>
    %335 = arith.mulf %334, %333 : vector<16x16xf32>
    %336 = arith.addf %330, %335 : vector<16x16xf32>
    %c54 = arith.constant 54 : index
    %337 = memref.load %arg2[%c54] : memref<98xf32, #tpu.memory_space<smem>>
    %c1_175 = arith.constant 1 : index
    %c0_176 = arith.constant 0 : index
    %c5_177 = arith.constant 5 : index
    %338 = vector.load %arg4[%c1_175, %c0_176, %c5_177] : memref<2x22x22xf32, #tpu.memory_space<vmem>>, vector<1x16x16xf32>
    %339 = vector.shape_cast %338 : vector<1x16x16xf32> to vector<16x16xf32>
    %340 = vector.broadcast %337 : f32 to vector<16x16xf32>
    %341 = arith.mulf %340, %339 : vector<16x16xf32>
    %342 = arith.addf %336, %341 : vector<16x16xf32>
    %c55 = arith.constant 55 : index
    %343 = memref.load %arg2[%c55] : memref<98xf32, #tpu.memory_space<smem>>
    %c1_178 = arith.constant 1 : index
    %c0_179 = arith.constant 0 : index
    %c6_180 = arith.constant 6 : index
    %344 = vector.load %arg4[%c1_178, %c0_179, %c6_180] : memref<2x22x22xf32, #tpu.memory_space<vmem>>, vector<1x16x16xf32>
    %345 = vector.shape_cast %344 : vector<1x16x16xf32> to vector<16x16xf32>
    %346 = vector.broadcast %343 : f32 to vector<16x16xf32>
    %347 = arith.mulf %346, %345 : vector<16x16xf32>
    %348 = arith.addf %342, %347 : vector<16x16xf32>
    %c56 = arith.constant 56 : index
    %349 = memref.load %arg2[%c56] : memref<98xf32, #tpu.memory_space<smem>>
    %c1_181 = arith.constant 1 : index
    %c1_182 = arith.constant 1 : index
    %c0_183 = arith.constant 0 : index
    %350 = vector.load %arg4[%c1_181, %c1_182, %c0_183] : memref<2x22x22xf32, #tpu.memory_space<vmem>>, vector<1x16x16xf32>
    %351 = vector.shape_cast %350 : vector<1x16x16xf32> to vector<16x16xf32>
    %352 = vector.broadcast %349 : f32 to vector<16x16xf32>
    %353 = arith.mulf %352, %351 : vector<16x16xf32>
    %354 = arith.addf %348, %353 : vector<16x16xf32>
    %c57 = arith.constant 57 : index
    %355 = memref.load %arg2[%c57] : memref<98xf32, #tpu.memory_space<smem>>
    %c1_184 = arith.constant 1 : index
    %c1_185 = arith.constant 1 : index
    %c1_186 = arith.constant 1 : index
    %356 = vector.load %arg4[%c1_184, %c1_185, %c1_186] : memref<2x22x22xf32, #tpu.memory_space<vmem>>, vector<1x16x16xf32>
    %357 = vector.shape_cast %356 : vector<1x16x16xf32> to vector<16x16xf32>
    %358 = vector.broadcast %355 : f32 to vector<16x16xf32>
    %359 = arith.mulf %358, %357 : vector<16x16xf32>
    %360 = arith.addf %354, %359 : vector<16x16xf32>
    %c58 = arith.constant 58 : index
    %361 = memref.load %arg2[%c58] : memref<98xf32, #tpu.memory_space<smem>>
    %c1_187 = arith.constant 1 : index
    %c1_188 = arith.constant 1 : index
    %c2_189 = arith.constant 2 : index
    %362 = vector.load %arg4[%c1_187, %c1_188, %c2_189] : memref<2x22x22xf32, #tpu.memory_space<vmem>>, vector<1x16x16xf32>
    %363 = vector.shape_cast %362 : vector<1x16x16xf32> to vector<16x16xf32>
    %364 = vector.broadcast %361 : f32 to vector<16x16xf32>
    %365 = arith.mulf %364, %363 : vector<16x16xf32>
    %366 = arith.addf %360, %365 : vector<16x16xf32>
    %c59 = arith.constant 59 : index
    %367 = memref.load %arg2[%c59] : memref<98xf32, #tpu.memory_space<smem>>
    %c1_190 = arith.constant 1 : index
    %c1_191 = arith.constant 1 : index
    %c3_192 = arith.constant 3 : index
    %368 = vector.load %arg4[%c1_190, %c1_191, %c3_192] : memref<2x22x22xf32, #tpu.memory_space<vmem>>, vector<1x16x16xf32>
    %369 = vector.shape_cast %368 : vector<1x16x16xf32> to vector<16x16xf32>
    %370 = vector.broadcast %367 : f32 to vector<16x16xf32>
    %371 = arith.mulf %370, %369 : vector<16x16xf32>
    %372 = arith.addf %366, %371 : vector<16x16xf32>
    %c60 = arith.constant 60 : index
    %373 = memref.load %arg2[%c60] : memref<98xf32, #tpu.memory_space<smem>>
    %c1_193 = arith.constant 1 : index
    %c1_194 = arith.constant 1 : index
    %c4_195 = arith.constant 4 : index
    %374 = vector.load %arg4[%c1_193, %c1_194, %c4_195] : memref<2x22x22xf32, #tpu.memory_space<vmem>>, vector<1x16x16xf32>
    %375 = vector.shape_cast %374 : vector<1x16x16xf32> to vector<16x16xf32>
    %376 = vector.broadcast %373 : f32 to vector<16x16xf32>
    %377 = arith.mulf %376, %375 : vector<16x16xf32>
    %378 = arith.addf %372, %377 : vector<16x16xf32>
    %c61 = arith.constant 61 : index
    %379 = memref.load %arg2[%c61] : memref<98xf32, #tpu.memory_space<smem>>
    %c1_196 = arith.constant 1 : index
    %c1_197 = arith.constant 1 : index
    %c5_198 = arith.constant 5 : index
    %380 = vector.load %arg4[%c1_196, %c1_197, %c5_198] : memref<2x22x22xf32, #tpu.memory_space<vmem>>, vector<1x16x16xf32>
    %381 = vector.shape_cast %380 : vector<1x16x16xf32> to vector<16x16xf32>
    %382 = vector.broadcast %379 : f32 to vector<16x16xf32>
    %383 = arith.mulf %382, %381 : vector<16x16xf32>
    %384 = arith.addf %378, %383 : vector<16x16xf32>
    %c62 = arith.constant 62 : index
    %385 = memref.load %arg2[%c62] : memref<98xf32, #tpu.memory_space<smem>>
    %c1_199 = arith.constant 1 : index
    %c1_200 = arith.constant 1 : index
    %c6_201 = arith.constant 6 : index
    %386 = vector.load %arg4[%c1_199, %c1_200, %c6_201] : memref<2x22x22xf32, #tpu.memory_space<vmem>>, vector<1x16x16xf32>
    %387 = vector.shape_cast %386 : vector<1x16x16xf32> to vector<16x16xf32>
    %388 = vector.broadcast %385 : f32 to vector<16x16xf32>
    %389 = arith.mulf %388, %387 : vector<16x16xf32>
    %390 = arith.addf %384, %389 : vector<16x16xf32>
    %c63 = arith.constant 63 : index
    %391 = memref.load %arg2[%c63] : memref<98xf32, #tpu.memory_space<smem>>
    %c1_202 = arith.constant 1 : index
    %c2_203 = arith.constant 2 : index
    %c0_204 = arith.constant 0 : index
    %392 = vector.load %arg4[%c1_202, %c2_203, %c0_204] : memref<2x22x22xf32, #tpu.memory_space<vmem>>, vector<1x16x16xf32>
    %393 = vector.shape_cast %392 : vector<1x16x16xf32> to vector<16x16xf32>
    %394 = vector.broadcast %391 : f32 to vector<16x16xf32>
    %395 = arith.mulf %394, %393 : vector<16x16xf32>
    %396 = arith.addf %390, %395 : vector<16x16xf32>
    %c64 = arith.constant 64 : index
    %397 = memref.load %arg2[%c64] : memref<98xf32, #tpu.memory_space<smem>>
    %c1_205 = arith.constant 1 : index
    %c2_206 = arith.constant 2 : index
    %c1_207 = arith.constant 1 : index
    %398 = vector.load %arg4[%c1_205, %c2_206, %c1_207] : memref<2x22x22xf32, #tpu.memory_space<vmem>>, vector<1x16x16xf32>
    %399 = vector.shape_cast %398 : vector<1x16x16xf32> to vector<16x16xf32>
    %400 = vector.broadcast %397 : f32 to vector<16x16xf32>
    %401 = arith.mulf %400, %399 : vector<16x16xf32>
    %402 = arith.addf %396, %401 : vector<16x16xf32>
    %c65 = arith.constant 65 : index
    %403 = memref.load %arg2[%c65] : memref<98xf32, #tpu.memory_space<smem>>
    %c1_208 = arith.constant 1 : index
    %c2_209 = arith.constant 2 : index
    %c2_210 = arith.constant 2 : index
    %404 = vector.load %arg4[%c1_208, %c2_209, %c2_210] : memref<2x22x22xf32, #tpu.memory_space<vmem>>, vector<1x16x16xf32>
    %405 = vector.shape_cast %404 : vector<1x16x16xf32> to vector<16x16xf32>
    %406 = vector.broadcast %403 : f32 to vector<16x16xf32>
    %407 = arith.mulf %406, %405 : vector<16x16xf32>
    %408 = arith.addf %402, %407 : vector<16x16xf32>
    %c66 = arith.constant 66 : index
    %409 = memref.load %arg2[%c66] : memref<98xf32, #tpu.memory_space<smem>>
    %c1_211 = arith.constant 1 : index
    %c2_212 = arith.constant 2 : index
    %c3_213 = arith.constant 3 : index
    %410 = vector.load %arg4[%c1_211, %c2_212, %c3_213] : memref<2x22x22xf32, #tpu.memory_space<vmem>>, vector<1x16x16xf32>
    %411 = vector.shape_cast %410 : vector<1x16x16xf32> to vector<16x16xf32>
    %412 = vector.broadcast %409 : f32 to vector<16x16xf32>
    %413 = arith.mulf %412, %411 : vector<16x16xf32>
    %414 = arith.addf %408, %413 : vector<16x16xf32>
    %c67 = arith.constant 67 : index
    %415 = memref.load %arg2[%c67] : memref<98xf32, #tpu.memory_space<smem>>
    %c1_214 = arith.constant 1 : index
    %c2_215 = arith.constant 2 : index
    %c4_216 = arith.constant 4 : index
    %416 = vector.load %arg4[%c1_214, %c2_215, %c4_216] : memref<2x22x22xf32, #tpu.memory_space<vmem>>, vector<1x16x16xf32>
    %417 = vector.shape_cast %416 : vector<1x16x16xf32> to vector<16x16xf32>
    %418 = vector.broadcast %415 : f32 to vector<16x16xf32>
    %419 = arith.mulf %418, %417 : vector<16x16xf32>
    %420 = arith.addf %414, %419 : vector<16x16xf32>
    %c68 = arith.constant 68 : index
    %421 = memref.load %arg2[%c68] : memref<98xf32, #tpu.memory_space<smem>>
    %c1_217 = arith.constant 1 : index
    %c2_218 = arith.constant 2 : index
    %c5_219 = arith.constant 5 : index
    %422 = vector.load %arg4[%c1_217, %c2_218, %c5_219] : memref<2x22x22xf32, #tpu.memory_space<vmem>>, vector<1x16x16xf32>
    %423 = vector.shape_cast %422 : vector<1x16x16xf32> to vector<16x16xf32>
    %424 = vector.broadcast %421 : f32 to vector<16x16xf32>
    %425 = arith.mulf %424, %423 : vector<16x16xf32>
    %426 = arith.addf %420, %425 : vector<16x16xf32>
    %c69 = arith.constant 69 : index
    %427 = memref.load %arg2[%c69] : memref<98xf32, #tpu.memory_space<smem>>
    %c1_220 = arith.constant 1 : index
    %c2_221 = arith.constant 2 : index
    %c6_222 = arith.constant 6 : index
    %428 = vector.load %arg4[%c1_220, %c2_221, %c6_222] : memref<2x22x22xf32, #tpu.memory_space<vmem>>, vector<1x16x16xf32>
    %429 = vector.shape_cast %428 : vector<1x16x16xf32> to vector<16x16xf32>
    %430 = vector.broadcast %427 : f32 to vector<16x16xf32>
    %431 = arith.mulf %430, %429 : vector<16x16xf32>
    %432 = arith.addf %426, %431 : vector<16x16xf32>
    %c70 = arith.constant 70 : index
    %433 = memref.load %arg2[%c70] : memref<98xf32, #tpu.memory_space<smem>>
    %c1_223 = arith.constant 1 : index
    %c3_224 = arith.constant 3 : index
    %c0_225 = arith.constant 0 : index
    %434 = vector.load %arg4[%c1_223, %c3_224, %c0_225] : memref<2x22x22xf32, #tpu.memory_space<vmem>>, vector<1x16x16xf32>
    %435 = vector.shape_cast %434 : vector<1x16x16xf32> to vector<16x16xf32>
    %436 = vector.broadcast %433 : f32 to vector<16x16xf32>
    %437 = arith.mulf %436, %435 : vector<16x16xf32>
    %438 = arith.addf %432, %437 : vector<16x16xf32>
    %c71 = arith.constant 71 : index
    %439 = memref.load %arg2[%c71] : memref<98xf32, #tpu.memory_space<smem>>
    %c1_226 = arith.constant 1 : index
    %c3_227 = arith.constant 3 : index
    %c1_228 = arith.constant 1 : index
    %440 = vector.load %arg4[%c1_226, %c3_227, %c1_228] : memref<2x22x22xf32, #tpu.memory_space<vmem>>, vector<1x16x16xf32>
    %441 = vector.shape_cast %440 : vector<1x16x16xf32> to vector<16x16xf32>
    %442 = vector.broadcast %439 : f32 to vector<16x16xf32>
    %443 = arith.mulf %442, %441 : vector<16x16xf32>
    %444 = arith.addf %438, %443 : vector<16x16xf32>
    %c72 = arith.constant 72 : index
    %445 = memref.load %arg2[%c72] : memref<98xf32, #tpu.memory_space<smem>>
    %c1_229 = arith.constant 1 : index
    %c3_230 = arith.constant 3 : index
    %c2_231 = arith.constant 2 : index
    %446 = vector.load %arg4[%c1_229, %c3_230, %c2_231] : memref<2x22x22xf32, #tpu.memory_space<vmem>>, vector<1x16x16xf32>
    %447 = vector.shape_cast %446 : vector<1x16x16xf32> to vector<16x16xf32>
    %448 = vector.broadcast %445 : f32 to vector<16x16xf32>
    %449 = arith.mulf %448, %447 : vector<16x16xf32>
    %450 = arith.addf %444, %449 : vector<16x16xf32>
    %c73 = arith.constant 73 : index
    %451 = memref.load %arg2[%c73] : memref<98xf32, #tpu.memory_space<smem>>
    %c1_232 = arith.constant 1 : index
    %c3_233 = arith.constant 3 : index
    %c3_234 = arith.constant 3 : index
    %452 = vector.load %arg4[%c1_232, %c3_233, %c3_234] : memref<2x22x22xf32, #tpu.memory_space<vmem>>, vector<1x16x16xf32>
    %453 = vector.shape_cast %452 : vector<1x16x16xf32> to vector<16x16xf32>
    %454 = vector.broadcast %451 : f32 to vector<16x16xf32>
    %455 = arith.mulf %454, %453 : vector<16x16xf32>
    %456 = arith.addf %450, %455 : vector<16x16xf32>
    %c74 = arith.constant 74 : index
    %457 = memref.load %arg2[%c74] : memref<98xf32, #tpu.memory_space<smem>>
    %c1_235 = arith.constant 1 : index
    %c3_236 = arith.constant 3 : index
    %c4_237 = arith.constant 4 : index
    %458 = vector.load %arg4[%c1_235, %c3_236, %c4_237] : memref<2x22x22xf32, #tpu.memory_space<vmem>>, vector<1x16x16xf32>
    %459 = vector.shape_cast %458 : vector<1x16x16xf32> to vector<16x16xf32>
    %460 = vector.broadcast %457 : f32 to vector<16x16xf32>
    %461 = arith.mulf %460, %459 : vector<16x16xf32>
    %462 = arith.addf %456, %461 : vector<16x16xf32>
    %c75 = arith.constant 75 : index
    %463 = memref.load %arg2[%c75] : memref<98xf32, #tpu.memory_space<smem>>
    %c1_238 = arith.constant 1 : index
    %c3_239 = arith.constant 3 : index
    %c5_240 = arith.constant 5 : index
    %464 = vector.load %arg4[%c1_238, %c3_239, %c5_240] : memref<2x22x22xf32, #tpu.memory_space<vmem>>, vector<1x16x16xf32>
    %465 = vector.shape_cast %464 : vector<1x16x16xf32> to vector<16x16xf32>
    %466 = vector.broadcast %463 : f32 to vector<16x16xf32>
    %467 = arith.mulf %466, %465 : vector<16x16xf32>
    %468 = arith.addf %462, %467 : vector<16x16xf32>
    %c76 = arith.constant 76 : index
    %469 = memref.load %arg2[%c76] : memref<98xf32, #tpu.memory_space<smem>>
    %c1_241 = arith.constant 1 : index
    %c3_242 = arith.constant 3 : index
    %c6_243 = arith.constant 6 : index
    %470 = vector.load %arg4[%c1_241, %c3_242, %c6_243] : memref<2x22x22xf32, #tpu.memory_space<vmem>>, vector<1x16x16xf32>
    %471 = vector.shape_cast %470 : vector<1x16x16xf32> to vector<16x16xf32>
    %472 = vector.broadcast %469 : f32 to vector<16x16xf32>
    %473 = arith.mulf %472, %471 : vector<16x16xf32>
    %474 = arith.addf %468, %473 : vector<16x16xf32>
    %c77 = arith.constant 77 : index
    %475 = memref.load %arg2[%c77] : memref<98xf32, #tpu.memory_space<smem>>
    %c1_244 = arith.constant 1 : index
    %c4_245 = arith.constant 4 : index
    %c0_246 = arith.constant 0 : index
    %476 = vector.load %arg4[%c1_244, %c4_245, %c0_246] : memref<2x22x22xf32, #tpu.memory_space<vmem>>, vector<1x16x16xf32>
    %477 = vector.shape_cast %476 : vector<1x16x16xf32> to vector<16x16xf32>
    %478 = vector.broadcast %475 : f32 to vector<16x16xf32>
    %479 = arith.mulf %478, %477 : vector<16x16xf32>
    %480 = arith.addf %474, %479 : vector<16x16xf32>
    %c78 = arith.constant 78 : index
    %481 = memref.load %arg2[%c78] : memref<98xf32, #tpu.memory_space<smem>>
    %c1_247 = arith.constant 1 : index
    %c4_248 = arith.constant 4 : index
    %c1_249 = arith.constant 1 : index
    %482 = vector.load %arg4[%c1_247, %c4_248, %c1_249] : memref<2x22x22xf32, #tpu.memory_space<vmem>>, vector<1x16x16xf32>
    %483 = vector.shape_cast %482 : vector<1x16x16xf32> to vector<16x16xf32>
    %484 = vector.broadcast %481 : f32 to vector<16x16xf32>
    %485 = arith.mulf %484, %483 : vector<16x16xf32>
    %486 = arith.addf %480, %485 : vector<16x16xf32>
    %c79 = arith.constant 79 : index
    %487 = memref.load %arg2[%c79] : memref<98xf32, #tpu.memory_space<smem>>
    %c1_250 = arith.constant 1 : index
    %c4_251 = arith.constant 4 : index
    %c2_252 = arith.constant 2 : index
    %488 = vector.load %arg4[%c1_250, %c4_251, %c2_252] : memref<2x22x22xf32, #tpu.memory_space<vmem>>, vector<1x16x16xf32>
    %489 = vector.shape_cast %488 : vector<1x16x16xf32> to vector<16x16xf32>
    %490 = vector.broadcast %487 : f32 to vector<16x16xf32>
    %491 = arith.mulf %490, %489 : vector<16x16xf32>
    %492 = arith.addf %486, %491 : vector<16x16xf32>
    %c80 = arith.constant 80 : index
    %493 = memref.load %arg2[%c80] : memref<98xf32, #tpu.memory_space<smem>>
    %c1_253 = arith.constant 1 : index
    %c4_254 = arith.constant 4 : index
    %c3_255 = arith.constant 3 : index
    %494 = vector.load %arg4[%c1_253, %c4_254, %c3_255] : memref<2x22x22xf32, #tpu.memory_space<vmem>>, vector<1x16x16xf32>
    %495 = vector.shape_cast %494 : vector<1x16x16xf32> to vector<16x16xf32>
    %496 = vector.broadcast %493 : f32 to vector<16x16xf32>
    %497 = arith.mulf %496, %495 : vector<16x16xf32>
    %498 = arith.addf %492, %497 : vector<16x16xf32>
    %c81 = arith.constant 81 : index
    %499 = memref.load %arg2[%c81] : memref<98xf32, #tpu.memory_space<smem>>
    %c1_256 = arith.constant 1 : index
    %c4_257 = arith.constant 4 : index
    %c4_258 = arith.constant 4 : index
    %500 = vector.load %arg4[%c1_256, %c4_257, %c4_258] : memref<2x22x22xf32, #tpu.memory_space<vmem>>, vector<1x16x16xf32>
    %501 = vector.shape_cast %500 : vector<1x16x16xf32> to vector<16x16xf32>
    %502 = vector.broadcast %499 : f32 to vector<16x16xf32>
    %503 = arith.mulf %502, %501 : vector<16x16xf32>
    %504 = arith.addf %498, %503 : vector<16x16xf32>
    %c82 = arith.constant 82 : index
    %505 = memref.load %arg2[%c82] : memref<98xf32, #tpu.memory_space<smem>>
    %c1_259 = arith.constant 1 : index
    %c4_260 = arith.constant 4 : index
    %c5_261 = arith.constant 5 : index
    %506 = vector.load %arg4[%c1_259, %c4_260, %c5_261] : memref<2x22x22xf32, #tpu.memory_space<vmem>>, vector<1x16x16xf32>
    %507 = vector.shape_cast %506 : vector<1x16x16xf32> to vector<16x16xf32>
    %508 = vector.broadcast %505 : f32 to vector<16x16xf32>
    %509 = arith.mulf %508, %507 : vector<16x16xf32>
    %510 = arith.addf %504, %509 : vector<16x16xf32>
    %c83 = arith.constant 83 : index
    %511 = memref.load %arg2[%c83] : memref<98xf32, #tpu.memory_space<smem>>
    %c1_262 = arith.constant 1 : index
    %c4_263 = arith.constant 4 : index
    %c6_264 = arith.constant 6 : index
    %512 = vector.load %arg4[%c1_262, %c4_263, %c6_264] : memref<2x22x22xf32, #tpu.memory_space<vmem>>, vector<1x16x16xf32>
    %513 = vector.shape_cast %512 : vector<1x16x16xf32> to vector<16x16xf32>
    %514 = vector.broadcast %511 : f32 to vector<16x16xf32>
    %515 = arith.mulf %514, %513 : vector<16x16xf32>
    %516 = arith.addf %510, %515 : vector<16x16xf32>
    %c84 = arith.constant 84 : index
    %517 = memref.load %arg2[%c84] : memref<98xf32, #tpu.memory_space<smem>>
    %c1_265 = arith.constant 1 : index
    %c5_266 = arith.constant 5 : index
    %c0_267 = arith.constant 0 : index
    %518 = vector.load %arg4[%c1_265, %c5_266, %c0_267] : memref<2x22x22xf32, #tpu.memory_space<vmem>>, vector<1x16x16xf32>
    %519 = vector.shape_cast %518 : vector<1x16x16xf32> to vector<16x16xf32>
    %520 = vector.broadcast %517 : f32 to vector<16x16xf32>
    %521 = arith.mulf %520, %519 : vector<16x16xf32>
    %522 = arith.addf %516, %521 : vector<16x16xf32>
    %c85 = arith.constant 85 : index
    %523 = memref.load %arg2[%c85] : memref<98xf32, #tpu.memory_space<smem>>
    %c1_268 = arith.constant 1 : index
    %c5_269 = arith.constant 5 : index
    %c1_270 = arith.constant 1 : index
    %524 = vector.load %arg4[%c1_268, %c5_269, %c1_270] : memref<2x22x22xf32, #tpu.memory_space<vmem>>, vector<1x16x16xf32>
    %525 = vector.shape_cast %524 : vector<1x16x16xf32> to vector<16x16xf32>
    %526 = vector.broadcast %523 : f32 to vector<16x16xf32>
    %527 = arith.mulf %526, %525 : vector<16x16xf32>
    %528 = arith.addf %522, %527 : vector<16x16xf32>
    %c86 = arith.constant 86 : index
    %529 = memref.load %arg2[%c86] : memref<98xf32, #tpu.memory_space<smem>>
    %c1_271 = arith.constant 1 : index
    %c5_272 = arith.constant 5 : index
    %c2_273 = arith.constant 2 : index
    %530 = vector.load %arg4[%c1_271, %c5_272, %c2_273] : memref<2x22x22xf32, #tpu.memory_space<vmem>>, vector<1x16x16xf32>
    %531 = vector.shape_cast %530 : vector<1x16x16xf32> to vector<16x16xf32>
    %532 = vector.broadcast %529 : f32 to vector<16x16xf32>
    %533 = arith.mulf %532, %531 : vector<16x16xf32>
    %534 = arith.addf %528, %533 : vector<16x16xf32>
    %c87 = arith.constant 87 : index
    %535 = memref.load %arg2[%c87] : memref<98xf32, #tpu.memory_space<smem>>
    %c1_274 = arith.constant 1 : index
    %c5_275 = arith.constant 5 : index
    %c3_276 = arith.constant 3 : index
    %536 = vector.load %arg4[%c1_274, %c5_275, %c3_276] : memref<2x22x22xf32, #tpu.memory_space<vmem>>, vector<1x16x16xf32>
    %537 = vector.shape_cast %536 : vector<1x16x16xf32> to vector<16x16xf32>
    %538 = vector.broadcast %535 : f32 to vector<16x16xf32>
    %539 = arith.mulf %538, %537 : vector<16x16xf32>
    %540 = arith.addf %534, %539 : vector<16x16xf32>
    %c88 = arith.constant 88 : index
    %541 = memref.load %arg2[%c88] : memref<98xf32, #tpu.memory_space<smem>>
    %c1_277 = arith.constant 1 : index
    %c5_278 = arith.constant 5 : index
    %c4_279 = arith.constant 4 : index
    %542 = vector.load %arg4[%c1_277, %c5_278, %c4_279] : memref<2x22x22xf32, #tpu.memory_space<vmem>>, vector<1x16x16xf32>
    %543 = vector.shape_cast %542 : vector<1x16x16xf32> to vector<16x16xf32>
    %544 = vector.broadcast %541 : f32 to vector<16x16xf32>
    %545 = arith.mulf %544, %543 : vector<16x16xf32>
    %546 = arith.addf %540, %545 : vector<16x16xf32>
    %c89 = arith.constant 89 : index
    %547 = memref.load %arg2[%c89] : memref<98xf32, #tpu.memory_space<smem>>
    %c1_280 = arith.constant 1 : index
    %c5_281 = arith.constant 5 : index
    %c5_282 = arith.constant 5 : index
    %548 = vector.load %arg4[%c1_280, %c5_281, %c5_282] : memref<2x22x22xf32, #tpu.memory_space<vmem>>, vector<1x16x16xf32>
    %549 = vector.shape_cast %548 : vector<1x16x16xf32> to vector<16x16xf32>
    %550 = vector.broadcast %547 : f32 to vector<16x16xf32>
    %551 = arith.mulf %550, %549 : vector<16x16xf32>
    %552 = arith.addf %546, %551 : vector<16x16xf32>
    %c90 = arith.constant 90 : index
    %553 = memref.load %arg2[%c90] : memref<98xf32, #tpu.memory_space<smem>>
    %c1_283 = arith.constant 1 : index
    %c5_284 = arith.constant 5 : index
    %c6_285 = arith.constant 6 : index
    %554 = vector.load %arg4[%c1_283, %c5_284, %c6_285] : memref<2x22x22xf32, #tpu.memory_space<vmem>>, vector<1x16x16xf32>
    %555 = vector.shape_cast %554 : vector<1x16x16xf32> to vector<16x16xf32>
    %556 = vector.broadcast %553 : f32 to vector<16x16xf32>
    %557 = arith.mulf %556, %555 : vector<16x16xf32>
    %558 = arith.addf %552, %557 : vector<16x16xf32>
    %c91 = arith.constant 91 : index
    %559 = memref.load %arg2[%c91] : memref<98xf32, #tpu.memory_space<smem>>
    %c1_286 = arith.constant 1 : index
    %c6_287 = arith.constant 6 : index
    %c0_288 = arith.constant 0 : index
    %560 = vector.load %arg4[%c1_286, %c6_287, %c0_288] : memref<2x22x22xf32, #tpu.memory_space<vmem>>, vector<1x16x16xf32>
    %561 = vector.shape_cast %560 : vector<1x16x16xf32> to vector<16x16xf32>
    %562 = vector.broadcast %559 : f32 to vector<16x16xf32>
    %563 = arith.mulf %562, %561 : vector<16x16xf32>
    %564 = arith.addf %558, %563 : vector<16x16xf32>
    %c92 = arith.constant 92 : index
    %565 = memref.load %arg2[%c92] : memref<98xf32, #tpu.memory_space<smem>>
    %c1_289 = arith.constant 1 : index
    %c6_290 = arith.constant 6 : index
    %c1_291 = arith.constant 1 : index
    %566 = vector.load %arg4[%c1_289, %c6_290, %c1_291] : memref<2x22x22xf32, #tpu.memory_space<vmem>>, vector<1x16x16xf32>
    %567 = vector.shape_cast %566 : vector<1x16x16xf32> to vector<16x16xf32>
    %568 = vector.broadcast %565 : f32 to vector<16x16xf32>
    %569 = arith.mulf %568, %567 : vector<16x16xf32>
    %570 = arith.addf %564, %569 : vector<16x16xf32>
    %c93 = arith.constant 93 : index
    %571 = memref.load %arg2[%c93] : memref<98xf32, #tpu.memory_space<smem>>
    %c1_292 = arith.constant 1 : index
    %c6_293 = arith.constant 6 : index
    %c2_294 = arith.constant 2 : index
    %572 = vector.load %arg4[%c1_292, %c6_293, %c2_294] : memref<2x22x22xf32, #tpu.memory_space<vmem>>, vector<1x16x16xf32>
    %573 = vector.shape_cast %572 : vector<1x16x16xf32> to vector<16x16xf32>
    %574 = vector.broadcast %571 : f32 to vector<16x16xf32>
    %575 = arith.mulf %574, %573 : vector<16x16xf32>
    %576 = arith.addf %570, %575 : vector<16x16xf32>
    %c94 = arith.constant 94 : index
    %577 = memref.load %arg2[%c94] : memref<98xf32, #tpu.memory_space<smem>>
    %c1_295 = arith.constant 1 : index
    %c6_296 = arith.constant 6 : index
    %c3_297 = arith.constant 3 : index
    %578 = vector.load %arg4[%c1_295, %c6_296, %c3_297] : memref<2x22x22xf32, #tpu.memory_space<vmem>>, vector<1x16x16xf32>
    %579 = vector.shape_cast %578 : vector<1x16x16xf32> to vector<16x16xf32>
    %580 = vector.broadcast %577 : f32 to vector<16x16xf32>
    %581 = arith.mulf %580, %579 : vector<16x16xf32>
    %582 = arith.addf %576, %581 : vector<16x16xf32>
    %c95 = arith.constant 95 : index
    %583 = memref.load %arg2[%c95] : memref<98xf32, #tpu.memory_space<smem>>
    %c1_298 = arith.constant 1 : index
    %c6_299 = arith.constant 6 : index
    %c4_300 = arith.constant 4 : index
    %584 = vector.load %arg4[%c1_298, %c6_299, %c4_300] : memref<2x22x22xf32, #tpu.memory_space<vmem>>, vector<1x16x16xf32>
    %585 = vector.shape_cast %584 : vector<1x16x16xf32> to vector<16x16xf32>
    %586 = vector.broadcast %583 : f32 to vector<16x16xf32>
    %587 = arith.mulf %586, %585 : vector<16x16xf32>
    %588 = arith.addf %582, %587 : vector<16x16xf32>
    %c96 = arith.constant 96 : index
    %589 = memref.load %arg2[%c96] : memref<98xf32, #tpu.memory_space<smem>>
    %c1_301 = arith.constant 1 : index
    %c6_302 = arith.constant 6 : index
    %c5_303 = arith.constant 5 : index
    %590 = vector.load %arg4[%c1_301, %c6_302, %c5_303] : memref<2x22x22xf32, #tpu.memory_space<vmem>>, vector<1x16x16xf32>
    %591 = vector.shape_cast %590 : vector<1x16x16xf32> to vector<16x16xf32>
    %592 = vector.broadcast %589 : f32 to vector<16x16xf32>
    %593 = arith.mulf %592, %591 : vector<16x16xf32>
    %594 = arith.addf %588, %593 : vector<16x16xf32>
    %c97 = arith.constant 97 : index
    %595 = memref.load %arg2[%c97] : memref<98xf32, #tpu.memory_space<smem>>
    %c1_304 = arith.constant 1 : index
    %c6_305 = arith.constant 6 : index
    %c6_306 = arith.constant 6 : index
    %596 = vector.load %arg4[%c1_304, %c6_305, %c6_306] : memref<2x22x22xf32, #tpu.memory_space<vmem>>, vector<1x16x16xf32>
    %597 = vector.shape_cast %596 : vector<1x16x16xf32> to vector<16x16xf32>
    %598 = vector.broadcast %595 : f32 to vector<16x16xf32>
    %599 = arith.mulf %598, %597 : vector<16x16xf32>
    %600 = arith.addf %594, %599 : vector<16x16xf32>
    %601 = arith.negf %600 : vector<16x16xf32>
    %602 = math.exp %601 : vector<16x16xf32>
    %cst_307 = arith.constant 1.000000e+00 : f32
    %603 = vector.broadcast %cst_307 : f32 to vector<16x16xf32>
    %604 = arith.addf %603, %602 : vector<16x16xf32>
    %605 = arith.divf %603, %604 : vector<16x16xf32>
    %c0_308 = arith.constant 0 : index
    %c0_309 = arith.constant 0 : index
    %c3_310 = arith.constant 3 : index
    %c3_311 = arith.constant 3 : index
    %606 = vector.load %arg1[%c0_308, %c0_309, %c3_310, %c3_311] : memref<1x8x22x22xf32, #tpu.memory_space<vmem>>, vector<1x8x16x16xf32>
    %607 = vector.shape_cast %606 : vector<1x8x16x16xf32> to vector<8x16x16xf32>
    %608 = vector.shape_cast %605 : vector<16x16xf32> to vector<1x16x16xf32>
    %609 = vector.broadcast %608 : vector<1x16x16xf32> to vector<8x16x16xf32>
    %610 = arith.mulf %607, %609 : vector<8x16x16xf32>
    %c0_312 = arith.constant 0 : index
    %c0_313 = arith.constant 0 : index
    %c0_314 = arith.constant 0 : index
    %c0_315 = arith.constant 0 : index
    %611 = vector.load %arg3[%c0_312, %c0_313, %c0_314, %c0_315] : memref<1x8x16x16xf32, #tpu.memory_space<vmem>>, vector<1x8x16x16xf32>
    %612 = vector.shape_cast %611 : vector<1x8x16x16xf32> to vector<8x16x16xf32>
    %613 = vector.shape_cast %610 : vector<8x16x16xf32> to vector<1x8x16x16xf32>
    tpu.vector_store %arg3[%c0_312, %c0_313, %c0_314, %c0_315], %613 {strides = array<i32>} : memref<1x8x16x16xf32, #tpu.memory_space<vmem>>, vector<1x8x16x16xf32>,
    return
  }
  func.func @transform_0(%arg0: i32) -> (i32, i32, i32, i32) {
    %c0_i32 = arith.constant 0 : i32
    %c0_i32_0 = arith.constant 0 : i32
    %c0_i32_1 = arith.constant 0 : i32
    %c0_i32_2 = arith.constant 0 : i32
    return %arg0, %c0_i32, %c0_i32_0, %c0_i32_1 : i32, i32, i32, i32
  }
  func.func @transform_1(%arg0: i32) -> i32 {
    %c0_i32 = arith.constant 0 : i32
    %c0_i32_0 = arith.constant 0 : i32
    return %c0_i32 : i32
  }
  func.func @transform_2(%arg0: i32) -> (i32, i32, i32, i32) {
    %c0_i32 = arith.constant 0 : i32
    %c0_i32_0 = arith.constant 0 : i32
    %c0_i32_1 = arith.constant 0 : i32
    %c0_i32_2 = arith.constant 0 : i32
    return %arg0, %c0_i32, %c0_i32_0, %c0_i32_1 : i32, i32, i32, i32
  }
}

</mosaic_0001>

<llo_original>
// kernel: spatial_attention.1
$region0: #{spatial_attention.1}
  #allocation0 [shape = 'u32[]', space=smem, size = 0x4, offset = 0x4, fixed_abs, tag = 'smem constant byte address 0x4 - core index']
  #allocation1 [shape = 'u32[144,128]{1,0:T(1,128)}', space=vmem, size = 0x12000, scoped, tag = 'internal scratch']
  #allocation2 [shape = 'f32[2,22,22]{2,1,0:T(8,128)}', space=vmem, size = 0x6000, scoped, tag = 'scratch operand']
  %s0 = inlined_call_operand.vmem [shape: f32[2,8,22,22], index: 0, kind: input, shape index: {}]
  %s1 = inlined_call_operand.vmem [shape: f32[98], index: 1, kind: input, shape index: {}]
  %s2 = inlined_call_operand.hbm [shape: f32[2,8,16,16], index: 2, kind: output, shape index: {}]
  %s3 = sld [smem:[#allocation0]]
  $region45: #{spatial_attention.1} parent=0
    _
  %s5 = ssub.s32 1, %s3
  %s6 = scalar_select 0, %s5, %s3
  $region1: #{spatial_attention.1} parent=0
    #allocation3 [shape = 'u8[512]{0}', space=smem, size = 0x200, scoped, tag = 'input window, operand 1, single buffered']
    #allocation4 [shape = 's32[2]{0}', space=sflag, size = 0x8, scoped, tag = 'scoped memory for spatial_attention.1']
    #allocation5 [shape = 's32[2]{0}', space=sflag, size = 0x8, scoped, tag = 'scoped memory for spatial_attention.1']
    #allocation6 [shape = 'u8[131072]{0}', space=vmem, size = 0x20000, scoped, tag = 'output window, operand 0']
    %7 = vsyncpa [#allocation5], 0
    %8 = vsyncpa [#allocation4], 0
    %s9 = scalar_lea.sflag [#allocation4], 1
    %10 = vsyncpa %s9, 0
    loop: start=0, step=1, limit=4
    $region2: #{spatial_attention.1} parent=1 // loop_pre_header
      _
    $region3: #{spatial_attention.1} parent=1 // loop_header
      %s12 = sphi 0, %s16
      %p13 = scmp.ge.s32.totalorder %s12, 4
      %s22 = sphi 0, %s24
      %s25 = sphi 0, %s22
      %s26 = sphi 0, %s25
      %s42 = sphi 0, %s26
      %s46 = sphi 0, %s46
      %s48 = sphi 0, %s46
      %s49 = sphi 0, %s48
      %s63 = sphi 0, %s49
      %s69 = sphi 0, %s71
      %s72 = sphi 0, %s69
      %s73 = sphi 0, %s72
      %s89 = sphi 0, %s73
    $region4: #{spatial_attention.1} parent=1 // loop_header_branch
      %15 = sbr.rel (%p13) target = $region8
    $region5: #{spatial_attention.1} parent=1 // loop_body
      %s17 = ssub.s32 %s12, 1
      %s18 = ssub.s32 %s12, 2
      %s19 = sadd.s32 %s12, 1
      %s20 = ssub.s32 %s12, %s19
      %p21 = scmp.eq.s32.totalorder %s20, 0
      %s23 = sadd.s32 %s22, 1
      %s24 = scalar_select %p21, %s22, %s23
      %p27 = pneg %p21
      %p28 = scmp.eq.s32.totalorder %s12, 1
      %p29 = por %p27, %p28
      %p30 = scmp.ne.s32.totalorder %s22, %s25
      %p31 = scmp.eq.s32.totalorder %s12, 0
      %p32 = por %p30, %p31
      %p33 = scmp.ne.s32.totalorder %s22, %s25
      %p34 = scmp.eq.s32.totalorder %s17, 1
      %p35 = por %p33, %p34
      %p36 = scmp.ne.s32.totalorder %s25, %s26
      %p37 = scmp.eq.s32.totalorder %s17, 0
      %p38 = por %p36, %p37
      %p39 = scmp.ne.s32.totalorder %s25, %s26
      %p40 = scmp.eq.s32.totalorder %s18, 1
      %p41 = por %p39, %p40
      %p43 = scmp.ne.s32.totalorder %s26, %s42
      %p44 = scmp.eq.s32.totalorder %s18, 0
      %p45 = por %p43, %p44
      %s47 = sadd.s32 %s46, 1
      %p50 = scmp.eq.s32.totalorder %s12, 1
      %p51 = scmp.ne.s32.totalorder %s46, %s48
      %p52 = scmp.eq.s32.totalorder %s12, 0
      %p53 = por %p51, %p52
      %p54 = scmp.ne.s32.totalorder %s46, %s48
      %p55 = scmp.eq.s32.totalorder %s17, 1
      %p56 = por %p54, %p55
      %p57 = scmp.ne.s32.totalorder %s48, %s49
      %p58 = scmp.eq.s32.totalorder %s17, 0
      %p59 = por %p57, %p58
      %p60 = scmp.ne.s32.totalorder %s48, %s49
      %p61 = scmp.eq.s32.totalorder %s18, 1
      %p62 = por %p60, %p61
      %p64 = scmp.ne.s32.totalorder %s49, %s63
      %p65 = scmp.eq.s32.totalorder %s18, 0
      %p66 = por %p64, %p65
      %s67 = ssub.s32 %s12, %s19
      %p68 = scmp.eq.s32.totalorder %s67, 0
      %s70 = sadd.s32 %s69, 1
      %s71 = scalar_select %p68, %s69, %s70
      %p74 = pneg %p68
      %p75 = scmp.eq.s32.totalorder %s12, 1
      %p76 = por %p74, %p75
      %p77 = scmp.ne.s32.totalorder %s69, %s72
      %p78 = scmp.eq.s32.totalorder %s12, 0
      %p79 = por %p77, %p78
      %p80 = scmp.ne.s32.totalorder %s69, %s72
      %p81 = scmp.eq.s32.totalorder %s17, 1
      %p82 = por %p80, %p81
      %p83 = scmp.ne.s32.totalorder %s72, %s73
      %p84 = scmp.eq.s32.totalorder %s17, 0
      %p85 = por %p83, %p84
      %p86 = scmp.ne.s32.totalorder %s72, %s73
      %p87 = scmp.eq.s32.totalorder %s18, 1
      %p88 = por %p86, %p87
      %p90 = scmp.ne.s32.totalorder %s73, %s89
      %p91 = scmp.eq.s32.totalorder %s18, 0
      %p92 = por %p90, %p91
      %p93 = scmp.le.s32.totalorder 1, %s12
      %p94 = scmp.lt.s32.totalorder %s12, 3
      %p95 = pnand %p93, %p94
      %p96 = pneg %p95
      // Predicated region
      $region9: #{spatial_attention.1} parent=5 // pred_check
        _
      $region10: #{spatial_attention.1} parent=5 // pred_check_branch
        %98 = sbr.rel (%p95) target = $region12
      $region11: #{spatial_attention.1} parent=5 // pred_region
        %s99 = ssub.s32 %s12, 1
        // Predicated region
        $region13: #{spatial_attention.1} parent=11 // pred_check
          %p100 = pneg %p59
        $region14: #{spatial_attention.1} parent=11 // pred_check_branch
          %102 = sbr.rel (%p100) target = $region16
        $region15: #{spatial_attention.1} parent=11 // pred_region
          %s104 = ssub.s32 16, 16
          %105 = vsyncadd [#allocation5], %s104
          %s107 = sshll.u32 %s1, 4
          %s108 = int_to_ptr.vmem [resolvable:$true] %s107
          %110 = dma.vmem_to_smem %s108, 16, [#allocation3], [#allocation5]
        $region16: #{spatial_attention.1} parent=11 // pred_fallthru
          _
      $region12: #{spatial_attention.1} parent=5 // pred_fallthru
        _
      %p111 = scmp.lt.s32.totalorder %s12, 2
      // Predicated region
      $region17: #{spatial_attention.1} parent=5 // pred_check
        %p112 = pneg %p111
      $region18: #{spatial_attention.1} parent=5 // pred_check_branch
        %114 = sbr.rel (%p112) target = $region20
      $region19: #{spatial_attention.1} parent=5 // pred_region
        // Predicated region
        $region21: #{spatial_attention.1} parent=19 // pred_check
          %p115 = pneg %p32
        $region22: #{spatial_attention.1} parent=19 // pred_check_branch
          %117 = sbr.rel (%p115) target = $region24
        $region23: #{spatial_attention.1} parent=19 // pred_region
          %p118 = scmp.lt.s32.totalorder %s12, 1
          %s119 = scalar_select %p118, %s12, 1
          %s120 = smul.addr %s119, 24
          %s121 = smul.addr %s120, 8
          %s122 = scalar_lea.vmem %s0, %s121
        $region24: #{spatial_attention.1} parent=19 // pred_fallthru
          _
      $region20: #{spatial_attention.1} parent=5 // pred_fallthru
        _
      %p123 = scmp.le.s32.totalorder 1, %s12
      %p124 = scmp.lt.s32.totalorder %s12, 3
      %p125 = pnand %p123, %p124
      %p126 = pneg %p125
      // Predicated region
      $region25: #{spatial_attention.1} parent=5 // pred_check
        _
      $region26: #{spatial_attention.1} parent=5 // pred_check_branch
        %128 = sbr.rel (%p125) target = $region28
      $region27: #{spatial_attention.1} parent=5 // pred_region
        %s129 = ssub.s32 %s12, 1
        // Predicated region
        $region29: #{spatial_attention.1} parent=27 // pred_check
          %p130 = pneg %p59
        $region30: #{spatial_attention.1} parent=27 // pred_check_branch
          %132 = sbr.rel (%p130) target = $region32
        $region31: #{spatial_attention.1} parent=27 // pred_region
          %133 = dma.done [#allocation5], 16
        $region32: #{spatial_attention.1} parent=27 // pred_fallthru
          _
        %134 = sfence
        %p135 = scmp.lt.s32.totalorder %s17, 1
        %s136 = scalar_select %p135, %s17, 1
        %s137 = smul.addr %s136, 24
        %s138 = smul.addr %s137, 8
        %s139 = scalar_lea.vmem %s0, %s138
        %p140 = pneg %p38
        %p141 = pneg %p35
        %p142 = pneg %p59
        %p143 = pneg %p56
        %p144 = pneg %p85
        %p145 = pneg %p82
        %s146 = sand.u32 %s72, 1
        %s147 = scalar_lea.sflag [#allocation4], %s146
        %s148 = sand.u32 %s72, 1
        %s149 = smul.addr %s148, 128
        %s150 = scalar_lea.vmem [#allocation6], %s149
        %p151 = scmp.lt.s32.totalorder %s17, 1
        %s152 = scalar_select %p151, %s17, 1
        %s153 = smul.addr %s152, 24
        %s154 = smul.addr %s153, 8
        %s155 = scalar_lea.vmem %s0, %s154
        %v156 = vld [vmem:[%s155] sm:$0xff]
        %v157 = vld [vmem:[%s155 + $0x8] sm:$0xff]
        %v158 = vld [vmem:[%s155 + $0x10] sm:$0x3f]
        %v159 = vld [vmem:[%s155 + $0x18] sm:$0xff]
        %v160 = vld [vmem:[%s155 + $0x20] sm:$0xff]
        %v161 = vld [vmem:[%s155 + $0x28] sm:$0x3f]
        %v162 = vld [vmem:[%s155 + $0x30] sm:$0xff]
        %v163 = vld [vmem:[%s155 + $0x38] sm:$0xff]
        %v164 = vld [vmem:[%s155 + $0x40] sm:$0x3f]
        %v165 = vld [vmem:[%s155 + $0x48] sm:$0xff]
        %v166 = vld [vmem:[%s155 + $0x50] sm:$0xff]
        %v167 = vld [vmem:[%s155 + $0x58] sm:$0x3f]
        %v168 = vld [vmem:[%s155 + $0x60] sm:$0xff]
        %v169 = vld [vmem:[%s155 + $0x68] sm:$0xff]
        %v170 = vld [vmem:[%s155 + $0x70] sm:$0x3f]
        %v171 = vld [vmem:[%s155 + $0x78] sm:$0xff]
        %v172 = vld [vmem:[%s155 + $0x80] sm:$0xff]
        %v173 = vld [vmem:[%s155 + $0x88] sm:$0x3f]
        %v174 = vld [vmem:[%s155 + $0x90] sm:$0xff]
        %v175 = vld [vmem:[%s155 + $0x98] sm:$0xff]
        %v176 = vld [vmem:[%s155 + $0xa0] sm:$0x3f]
        %v177 = vld [vmem:[%s155 + $0xa8] sm:$0xff]
        %v178 = vld [vmem:[%s155 + $0xb0] sm:$0xff]
        %v179 = vld [vmem:[%s155 + $0xb8] sm:$0x3f]
        %vm180 = vcmask 179200
        %v181 = vsel %vm180, %v156, 0.0
        %v182 = vsel %vm180, %v159, 0.0
        %v183 = vadd.f32 %v181, %v182
        %v184 = vsel %vm180, %v162, 0.0
        %v185 = vadd.f32 %v183, %v184
        %v186 = vsel %vm180, %v165, 0.0
        %v187 = vadd.f32 %v185, %v186
        %v188 = vsel %vm180, %v168, 0.0
        %v189 = vadd.f32 %v187, %v188
        %v190 = vsel %vm180, %v171, 0.0
        %v191 = vadd.f32 %v189, %v190
        %v192 = vsel %vm180, %v174, 0.0
        %v193 = vadd.f32 %v191, %v192
        %v194 = vsel %vm180, %v177, 0.0
        %v195 = vadd.f32 %v193, %v194
        %v196 = vsel %vm180, %v157, 0.0
        %v197 = vsel %vm180, %v160, 0.0
        %v198 = vadd.f32 %v196, %v197
        %v199 = vsel %vm180, %v163, 0.0
        %v200 = vadd.f32 %v198, %v199
        %v201 = vsel %vm180, %v166, 0.0
        %v202 = vadd.f32 %v200, %v201
        %v203 = vsel %vm180, %v169, 0.0
        %v204 = vadd.f32 %v202, %v203
        %v205 = vsel %vm180, %v172, 0.0
        %v206 = vadd.f32 %v204, %v205
        %v207 = vsel %vm180, %v175, 0.0
        %v208 = vadd.f32 %v206, %v207
        %v209 = vsel %vm180, %v178, 0.0
        %v210 = vadd.f32 %v208, %v209
        %vm211 = vcmask 177152
        %v212 = vsel %vm211, %v158, 0.0
        %v213 = vsel %vm211, %v161, 0.0
        %v214 = vadd.f32 %v212, %v213
        %v215 = vsel %vm211, %v164, 0.0
        %v216 = vadd.f32 %v214, %v215
        %v217 = vsel %vm211, %v167, 0.0
        %v218 = vadd.f32 %v216, %v217
        %v219 = vsel %vm211, %v170, 0.0
        %v220 = vadd.f32 %v218, %v219
        %v221 = vsel %vm211, %v173, 0.0
        %v222 = vadd.f32 %v220, %v221
        %v223 = vsel %vm211, %v176, 0.0
        %v224 = vadd.f32 %v222, %v223
        %v225 = vsel %vm211, %v179, 0.0
        %v226 = vadd.f32 %v224, %v225
        %v227 = vrcp.pop 8.0
        %v228 = vmul.f32 %v195, %v227
        %v229 = vmul.f32 %v210, %v227
        %v230 = vmul.f32 %v226, %v227
        %231 = vst.msk [vmem:[#allocation2] sm:$0xff] %vm180, %v228
        %232 = vst.msk [vmem:[#allocation2 + $0x8] sm:$0xff] %vm180, %v229
        %233 = vst.msk [vmem:[#allocation2 + $0x10] sm:$0x3f] %vm211, %v230
        %v234 = vsel %vm180, %v156, -inf
        %v235 = vsel %vm180, %v159, -inf
        %v236 = vsel %vm180, %v162, -inf
        %v237 = vmax.f32 %v234, %v236
        %v238 = vsel %vm180, %v165, -inf
        %v239 = vmax.f32 %v235, %v238
        %v240 = vsel %vm180, %v168, -inf
        %v241 = vmax.f32 %v237, %v240
        %v242 = vsel %vm180, %v171, -inf
        %v243 = vmax.f32 %v239, %v242
        %v244 = vsel %vm180, %v174, -inf
        %v245 = vmax.f32 %v241, %v244
        %v246 = vsel %vm180, %v177, -inf
        %v247 = vmax.f32 %v243, %v246
        %v248 = vmax.f32 %v245, %v247
        %v249 = vsel %vm180, %v157, -inf
        %v250 = vsel %vm180, %v160, -inf
        %v251 = vsel %vm180, %v163, -inf
        %v252 = vmax.f32 %v249, %v251
        %v253 = vsel %vm180, %v166, -inf
        %v254 = vmax.f32 %v250, %v253
        %v255 = vsel %vm180, %v169, -inf
        %v256 = vmax.f32 %v252, %v255
        %v257 = vsel %vm180, %v172, -inf
        %v258 = vmax.f32 %v254, %v257
        %v259 = vsel %vm180, %v175, -inf
        %v260 = vmax.f32 %v256, %v259
        %v261 = vsel %vm180, %v178, -inf
        %v262 = vmax.f32 %v258, %v261
        %v263 = vmax.f32 %v260, %v262
        %v264 = vsel %vm211, %v158, -inf
        %v265 = vsel %vm211, %v161, -inf
        %v266 = vsel %vm211, %v164, -inf
        %v267 = vmax.f32 %v264, %v266
        %v268 = vsel %vm211, %v167, -inf
        %v269 = vmax.f32 %v265, %v268
        %v270 = vsel %vm211, %v170, -inf
        %v271 = vmax.f32 %v267, %v270
        %v272 = vsel %vm211, %v173, -inf
        %v273 = vmax.f32 %v269, %v272
        %v274 = vsel %vm211, %v176, -inf
        %v275 = vmax.f32 %v271, %v274
        %v276 = vsel %vm211, %v179, -inf
        %v277 = vmax.f32 %v273, %v276
        %v278 = vmax.f32 %v275, %v277
        %s279 = scalar_lea.vmem [#allocation2], 24
        %280 = vst.msk [vmem:[%s279] sm:$0xff] %vm180, %v248
        %281 = vst.msk [vmem:[%s279 + $0x8] sm:$0xff] %vm180, %v263
        %282 = vst.msk [vmem:[%s279 + $0x10] sm:$0x3f] %vm211, %v278
        %s283 = sld [smem:[#allocation3]]
        %v284 = vld [vmem:[#allocation2] sm:$0xff]
        %v285 = vld [vmem:[#allocation2 + $0x8] sm:$0xff]
        %v286 = vstv %s283
        %v287 = vmul.f32 %v286, %v284
        %v288 = vmul.f32 %v286, %v285
        %v289 = vadd.f32 %v287, 0.0
        %v290 = vadd.f32 %v288, 0.0
        %s291 = sld [smem:[#allocation3 + $0x1]]
        %v292 = vstv %s291
        %v293 = vmul.f32 %v292, %v284
        %v294 = vmul.f32 %v292, %v285
        %297 = vrot.lane.b32.xlu0 %v293, 127
        %v298 = vpop.permute.xlu0 %297
        %299 = vrot.lane.b32.xlu0 %v294, 127
        %v300 = vpop.permute.xlu0 %299
        %v303 = vadd.f32 %v289, %v298
        %v304 = vadd.f32 %v290, %v300
        %s305 = sld [smem:[#allocation3 + $0x2]]
        %v306 = vstv %s305
        %v307 = vmul.f32 %v306, %v284
        %v308 = vmul.f32 %v306, %v285
        %311 = vrot.lane.b32.xlu0 %v307, 126
        %v312 = vpop.permute.xlu0 %311
        %313 = vrot.lane.b32.xlu0 %v308, 126
        %v314 = vpop.permute.xlu0 %313
        %v317 = vadd.f32 %v303, %v312
        %v318 = vadd.f32 %v304, %v314
        %s319 = sld [smem:[#allocation3 + $0x3]]
        %v320 = vstv %s319
        %v321 = vmul.f32 %v320, %v284
        %v322 = vmul.f32 %v320, %v285
        %325 = vrot.lane.b32.xlu0 %v321, 125
        %v326 = vpop.permute.xlu0 %325
        %327 = vrot.lane.b32.xlu0 %v322, 125
        %v328 = vpop.permute.xlu0 %327
        %v331 = vadd.f32 %v317, %v326
        %v332 = vadd.f32 %v318, %v328
        %s333 = sld [smem:[#allocation3 + $0x4]]
        %v334 = vstv %s333
        %v335 = vmul.f32 %v334, %v284
        %v336 = vmul.f32 %v334, %v285
        %339 = vrot.lane.b32.xlu0 %v335, 124
        %v340 = vpop.permute.xlu0 %339
        %341 = vrot.lane.b32.xlu0 %v336, 124
        %v342 = vpop.permute.xlu0 %341
        %v345 = vadd.f32 %v331, %v340
        %v346 = vadd.f32 %v332, %v342
        %s347 = sld [smem:[#allocation3 + $0x5]]
        %v348 = vstv %s347
        %v349 = vmul.f32 %v348, %v284
        %v350 = vmul.f32 %v348, %v285
        %353 = vrot.lane.b32.xlu0 %v349, 123
        %v354 = vpop.permute.xlu0 %353
        %355 = vrot.lane.b32.xlu0 %v350, 123
        %v356 = vpop.permute.xlu0 %355
        %v359 = vadd.f32 %v345, %v354
        %v360 = vadd.f32 %v346, %v356
        %s361 = sld [smem:[#allocation3 + $0x6]]
        %v362 = vstv %s361
        %v363 = vmul.f32 %v362, %v284
        %v364 = vmul.f32 %v362, %v285
        %367 = vrot.lane.b32.xlu0 %v363, 122
        %v368 = vpop.permute.xlu0 %367
        %369 = vrot.lane.b32.xlu0 %v364, 122
        %v370 = vpop.permute.xlu0 %369
        %v373 = vadd.f32 %v359, %v368
        %v374 = vadd.f32 %v360, %v370
        %s375 = sld [smem:[#allocation3 + $0x7]]
        %v376 = vld [vmem:[#allocation2 + $0x1] sm:$0xff]
        %v377 = vld [vmem:[#allocation2 + $0x9] sm:$0xff]
        %v378 = vstv %s375
        %v379 = vmul.f32 %v378, %v376
        %v380 = vmul.f32 %v378, %v377
        %v381 = vadd.f32 %v373, %v379
        %v382 = vadd.f32 %v374, %v380
        %s383 = sld [smem:[#allocation3 + $0x8]]
        %v384 = vstv %s383
        %v385 = vmul.f32 %v384, %v376
        %v386 = vmul.f32 %v384, %v377
        %389 = vrot.lane.b32.xlu0 %v385, 127
        %v390 = vpop.permute.xlu0 %389
        %391 = vrot.lane.b32.xlu0 %v386, 127
        %v392 = vpop.permute.xlu0 %391
        %v395 = vadd.f32 %v381, %v390
        %v396 = vadd.f32 %v382, %v392
        %s397 = sld [smem:[#allocation3 + $0x9]]
        %v398 = vstv %s397
        %v399 = vmul.f32 %v398, %v376
        %v400 = vmul.f32 %v398, %v377
        %403 = vrot.lane.b32.xlu0 %v399, 126
        %v404 = vpop.permute.xlu0 %403
        %405 = vrot.lane.b32.xlu0 %v400, 126
        %v406 = vpop.permute.xlu0 %405
        %v409 = vadd.f32 %v395, %v404
        %v410 = vadd.f32 %v396, %v406
        %s411 = sld [smem:[#allocation3 + $0xa]]
        %v412 = vstv %s411
        %v413 = vmul.f32 %v412, %v376
        %v414 = vmul.f32 %v412, %v377
        %417 = vrot.lane.b32.xlu0 %v413, 125
        %v418 = vpop.permute.xlu0 %417
        %419 = vrot.lane.b32.xlu0 %v414, 125
        %v420 = vpop.permute.xlu0 %419
        %v423 = vadd.f32 %v409, %v418
        %v424 = vadd.f32 %v410, %v420
        %s425 = sld [smem:[#allocation3 + $0xb]]
        %v426 = vstv %s425
        %v427 = vmul.f32 %v426, %v376
        %v428 = vmul.f32 %v426, %v377
        %431 = vrot.lane.b32.xlu0 %v427, 124
        %v432 = vpop.permute.xlu0 %431
        %433 = vrot.lane.b32.xlu0 %v428, 124
        %v434 = vpop.permute.xlu0 %433
        %v437 = vadd.f32 %v423, %v432
        %v438 = vadd.f32 %v424, %v434
        %s439 = sld [smem:[#allocation3 + $0xc]]
        %v440 = vstv %s439
        %v441 = vmul.f32 %v440, %v376
        %v442 = vmul.f32 %v440, %v377
        %445 = vrot.lane.b32.xlu0 %v441, 123
        %v446 = vpop.permute.xlu0 %445
        %447 = vrot.lane.b32.xlu0 %v442, 123
        %v448 = vpop.permute.xlu0 %447
        %v451 = vadd.f32 %v437, %v446
        %v452 = vadd.f32 %v438, %v448
        %s453 = sld [smem:[#allocation3 + $0xd]]
        %v454 = vstv %s453
        %v455 = vmul.f32 %v454, %v376
        %v456 = vmul.f32 %v454, %v377
        %459 = vrot.lane.b32.xlu0 %v455, 122
        %v460 = vpop.permute.xlu0 %459
        %461 = vrot.lane.b32.xlu0 %v456, 122
        %v462 = vpop.permute.xlu0 %461
        %v465 = vadd.f32 %v451, %v460
        %v466 = vadd.f32 %v452, %v462
        %s467 = sld [smem:[#allocation3 + $0xe]]
        %v468 = vld [vmem:[#allocation2 + $0x2] sm:$0xff]
        %v469 = vld [vmem:[#allocation2 + $0xa] sm:$0xff]
        %v470 = vstv %s467
        %v471 = vmul.f32 %v470, %v468
        %v472 = vmul.f32 %v470, %v469
        %v473 = vadd.f32 %v465, %v471
        %v474 = vadd.f32 %v466, %v472
        %s475 = sld [smem:[#allocation3 + $0xf]]
        %v476 = vstv %s475
        %v477 = vmul.f32 %v476, %v468
        %v478 = vmul.f32 %v476, %v469
        %481 = vrot.lane.b32.xlu0 %v477, 127
        %v482 = vpop.permute.xlu0 %481
        %483 = vrot.lane.b32.xlu0 %v478, 127
        %v484 = vpop.permute.xlu0 %483
        %v487 = vadd.f32 %v473, %v482
        %v488 = vadd.f32 %v474, %v484
        %s489 = sld [smem:[#allocation3 + $0x10]]
        %v490 = vstv %s489
        %v491 = vmul.f32 %v490, %v468
        %v492 = vmul.f32 %v490, %v469
        %495 = vrot.lane.b32.xlu0 %v491, 126
        %v496 = vpop.permute.xlu0 %495
        %497 = vrot.lane.b32.xlu0 %v492, 126
        %v498 = vpop.permute.xlu0 %497
        %v501 = vadd.f32 %v487, %v496
        %v502 = vadd.f32 %v488, %v498
        %s503 = sld [smem:[#allocation3 + $0x11]]
        %v504 = vstv %s503
        %v505 = vmul.f32 %v504, %v468
        %v506 = vmul.f32 %v504, %v469
        %509 = vrot.lane.b32.xlu0 %v505, 125
        %v510 = vpop.permute.xlu0 %509
        %511 = vrot.lane.b32.xlu0 %v506, 125
        %v512 = vpop.permute.xlu0 %511
        %v515 = vadd.f32 %v501, %v510
        %v516 = vadd.f32 %v502, %v512
        %s517 = sld [smem:[#allocation3 + $0x12]]
        %v518 = vstv %s517
        %v519 = vmul.f32 %v518, %v468
        %v520 = vmul.f32 %v518, %v469
        %523 = vrot.lane.b32.xlu0 %v519, 124
        %v524 = vpop.permute.xlu0 %523
        %525 = vrot.lane.b32.xlu0 %v520, 124
        %v526 = vpop.permute.xlu0 %525
        %v529 = vadd.f32 %v515, %v524
        %v530 = vadd.f32 %v516, %v526
        %s531 = sld [smem:[#allocation3 + $0x13]]
        %v532 = vstv %s531
        %v533 = vmul.f32 %v532, %v468
        %v534 = vmul.f32 %v532, %v469
        %537 = vrot.lane.b32.xlu0 %v533, 123
        %v538 = vpop.permute.xlu0 %537
        %539 = vrot.lane.b32.xlu0 %v534, 123
        %v540 = vpop.permute.xlu0 %539
        %v543 = vadd.f32 %v529, %v538
        %v544 = vadd.f32 %v530, %v540
        %s545 = sld [smem:[#allocation3 + $0x14]]
        %v546 = vstv %s545
        %v547 = vmul.f32 %v546, %v468
        %v548 = vmul.f32 %v546, %v469
        %551 = vrot.lane.b32.xlu0 %v547, 122
        %v552 = vpop.permute.xlu0 %551
        %553 = vrot.lane.b32.xlu0 %v548, 122
        %v554 = vpop.permute.xlu0 %553
        %v557 = vadd.f32 %v543, %v552
        %v558 = vadd.f32 %v544, %v554
        %s559 = sld [smem:[#allocation3 + $0x15]]
        %v560 = vld [vmem:[#allocation2 + $0x3] sm:$0xff]
        %v561 = vld [vmem:[#allocation2 + $0xb] sm:$0xff]
        %v562 = vstv %s559
        %v563 = vmul.f32 %v562, %v560
        %v564 = vmul.f32 %v562, %v561
        %v565 = vadd.f32 %v557, %v563
        %v566 = vadd.f32 %v558, %v564
        %s567 = sld [smem:[#allocation3 + $0x16]]
        %v568 = vstv %s567
        %v569 = vmul.f32 %v568, %v560
        %v570 = vmul.f32 %v568, %v561
        %573 = vrot.lane.b32.xlu0 %v569, 127
        %v574 = vpop.permute.xlu0 %573
        %575 = vrot.lane.b32.xlu0 %v570, 127
        %v576 = vpop.permute.xlu0 %575
        %v579 = vadd.f32 %v565, %v574
        %v580 = vadd.f32 %v566, %v576
        %s581 = sld [smem:[#allocation3 + $0x17]]
        %v582 = vstv %s581
        %v583 = vmul.f32 %v582, %v560
        %v584 = vmul.f32 %v582, %v561
        %587 = vrot.lane.b32.xlu0 %v583, 126
        %v588 = vpop.permute.xlu0 %587
        %589 = vrot.lane.b32.xlu0 %v584, 126
        %v590 = vpop.permute.xlu0 %589
        %v593 = vadd.f32 %v579, %v588
        %v594 = vadd.f32 %v580, %v590
        %s595 = sld [smem:[#allocation3 + $0x18]]
        %v596 = vstv %s595
        %v597 = vmul.f32 %v596, %v560
        %v598 = vmul.f32 %v596, %v561
        %601 = vrot.lane.b32.xlu0 %v597, 125
        %v602 = vpop.permute.xlu0 %601
        %603 = vrot.lane.b32.xlu0 %v598, 125
        %v604 = vpop.permute.xlu0 %603
        %v607 = vadd.f32 %v593, %v602
        %v608 = vadd.f32 %v594, %v604
        %s609 = sld [smem:[#allocation3 + $0x19]]
        %v610 = vstv %s609
        %v611 = vmul.f32 %v610, %v560
        %v612 = vmul.f32 %v610, %v561
        %615 = vrot.lane.b32.xlu0 %v611, 124
        %v616 = vpop.permute.xlu0 %615
        %617 = vrot.lane.b32.xlu0 %v612, 124
        %v618 = vpop.permute.xlu0 %617
        %v621 = vadd.f32 %v607, %v616
        %v622 = vadd.f32 %v608, %v618
        %s623 = sld [smem:[#allocation3 + $0x1a]]
        %v624 = vstv %s623
        %v625 = vmul.f32 %v624, %v560
        %v626 = vmul.f32 %v624, %v561
        %629 = vrot.lane.b32.xlu0 %v625, 123
        %v630 = vpop.permute.xlu0 %629
        %631 = vrot.lane.b32.xlu0 %v626, 123
        %v632 = vpop.permute.xlu0 %631
        %v635 = vadd.f32 %v621, %v630
        %v636 = vadd.f32 %v622, %v632
        %s637 = sld [smem:[#allocation3 + $0x1b]]
        %v638 = vstv %s637
        %v639 = vmul.f32 %v638, %v560
        %v640 = vmul.f32 %v638, %v561
        %643 = vrot.lane.b32.xlu0 %v639, 122
        %v644 = vpop.permute.xlu0 %643
        %645 = vrot.lane.b32.xlu0 %v640, 122
        %v646 = vpop.permute.xlu0 %645
        %v649 = vadd.f32 %v635, %v644
        %v650 = vadd.f32 %v636, %v646
        %s651 = sld [smem:[#allocation3 + $0x1c]]
        %v652 = vld [vmem:[#allocation2 + $0x4] sm:$0xff]
        %v653 = vld [vmem:[#allocation2 + $0xc] sm:$0xff]
        %v654 = vstv %s651
        %v655 = vmul.f32 %v654, %v652
        %v656 = vmul.f32 %v654, %v653
        %v657 = vadd.f32 %v649, %v655
        %v658 = vadd.f32 %v650, %v656
        %s659 = sld [smem:[#allocation3 + $0x1d]]
        %v660 = vstv %s659
        %v661 = vmul.f32 %v660, %v652
        %v662 = vmul.f32 %v660, %v653
        %665 = vrot.lane.b32.xlu0 %v661, 127
        %v666 = vpop.permute.xlu0 %665
        %667 = vrot.lane.b32.xlu0 %v662, 127
        %v668 = vpop.permute.xlu0 %667
        %v671 = vadd.f32 %v657, %v666
        %v672 = vadd.f32 %v658, %v668
        %s673 = sld [smem:[#allocation3 + $0x1e]]
        %v674 = vstv %s673
        %v675 = vmul.f32 %v674, %v652
        %v676 = vmul.f32 %v674, %v653
        %679 = vrot.lane.b32.xlu0 %v675, 126
        %v680 = vpop.permute.xlu0 %679
        %681 = vrot.lane.b32.xlu0 %v676, 126
        %v682 = vpop.permute.xlu0 %681
        %v685 = vadd.f32 %v671, %v680
        %v686 = vadd.f32 %v672, %v682
        %s687 = sld [smem:[#allocation3 + $0x1f]]
        %v688 = vstv %s687
        %v689 = vmul.f32 %v688, %v652
        %v690 = vmul.f32 %v688, %v653
        %693 = vrot.lane.b32.xlu0 %v689, 125
        %v694 = vpop.permute.xlu0 %693
        %695 = vrot.lane.b32.xlu0 %v690, 125
        %v696 = vpop.permute.xlu0 %695
        %v699 = vadd.f32 %v685, %v694
        %v700 = vadd.f32 %v686, %v696
        %s701 = sld [smem:[#allocation3 + $0x20]]
        %v702 = vstv %s701
        %v703 = vmul.f32 %v702, %v652
        %v704 = vmul.f32 %v702, %v653
        %707 = vrot.lane.b32.xlu0 %v703, 124
        %v708 = vpop.permute.xlu0 %707
        %709 = vrot.lane.b32.xlu0 %v704, 124
        %v710 = vpop.permute.xlu0 %709
        %v713 = vadd.f32 %v699, %v708
        %v714 = vadd.f32 %v700, %v710
        %s715 = sld [smem:[#allocation3 + $0x21]]
        %v716 = vstv %s715
        %v717 = vmul.f32 %v716, %v652
        %v718 = vmul.f32 %v716, %v653
        %721 = vrot.lane.b32.xlu0 %v717, 123
        %v722 = vpop.permute.xlu0 %721
        %723 = vrot.lane.b32.xlu0 %v718, 123
        %v724 = vpop.permute.xlu0 %723
        %v727 = vadd.f32 %v713, %v722
        %v728 = vadd.f32 %v714, %v724
        %s729 = sld [smem:[#allocation3 + $0x22]]
        %v730 = vstv %s729
        %v731 = vmul.f32 %v730, %v652
        %v732 = vmul.f32 %v730, %v653
        %735 = vrot.lane.b32.xlu0 %v731, 122
        %v736 = vpop.permute.xlu0 %735
        %737 = vrot.lane.b32.xlu0 %v732, 122
        %v738 = vpop.permute.xlu0 %737
        %v741 = vadd.f32 %v727, %v736
        %v742 = vadd.f32 %v728, %v738
        %s743 = sld [smem:[#allocation3 + $0x23]]
        %v744 = vld [vmem:[#allocation2 + $0x5] sm:$0xff]
        %v745 = vld [vmem:[#allocation2 + $0xd] sm:$0xff]
        %v746 = vstv %s743
        %v747 = vmul.f32 %v746, %v744
        %v748 = vmul.f32 %v746, %v745
        %v749 = vadd.f32 %v741, %v747
        %v750 = vadd.f32 %v742, %v748
        %s751 = sld [smem:[#allocation3 + $0x24]]
        %v752 = vstv %s751
        %v753 = vmul.f32 %v752, %v744
        %v754 = vmul.f32 %v752, %v745
        %757 = vrot.lane.b32.xlu0 %v753, 127
        %v758 = vpop.permute.xlu0 %757
        %759 = vrot.lane.b32.xlu0 %v754, 127
        %v760 = vpop.permute.xlu0 %759
        %v763 = vadd.f32 %v749, %v758
        %v764 = vadd.f32 %v750, %v760
        %s765 = sld [smem:[#allocation3 + $0x25]]
        %v766 = vstv %s765
        %v767 = vmul.f32 %v766, %v744
        %v768 = vmul.f32 %v766, %v745
        %771 = vrot.lane.b32.xlu0 %v767, 126
        %v772 = vpop.permute.xlu0 %771
        %773 = vrot.lane.b32.xlu0 %v768, 126
        %v774 = vpop.permute.xlu0 %773
        %v777 = vadd.f32 %v763, %v772
        %v778 = vadd.f32 %v764, %v774
        %s779 = sld [smem:[#allocation3 + $0x26]]
        %v780 = vstv %s779
        %v781 = vmul.f32 %v780, %v744
        %v782 = vmul.f32 %v780, %v745
        %785 = vrot.lane.b32.xlu0 %v781, 125
        %v786 = vpop.permute.xlu0 %785
        %787 = vrot.lane.b32.xlu0 %v782, 125
        %v788 = vpop.permute.xlu0 %787
        %v791 = vadd.f32 %v777, %v786
        %v792 = vadd.f32 %v778, %v788
        %s793 = sld [smem:[#allocation3 + $0x27]]
        %v794 = vstv %s793
        %v795 = vmul.f32 %v794, %v744
        %v796 = vmul.f32 %v794, %v745
        %799 = vrot.lane.b32.xlu0 %v795, 124
        %v800 = vpop.permute.xlu0 %799
        %801 = vrot.lane.b32.xlu0 %v796, 124
        %v802 = vpop.permute.xlu0 %801
        %v805 = vadd.f32 %v791, %v800
        %v806 = vadd.f32 %v792, %v802
        %s807 = sld [smem:[#allocation3 + $0x28]]
        %v808 = vstv %s807
        %v809 = vmul.f32 %v808, %v744
        %v810 = vmul.f32 %v808, %v745
        %813 = vrot.lane.b32.xlu0 %v809, 123
        %v814 = vpop.permute.xlu0 %813
        %815 = vrot.lane.b32.xlu0 %v810, 123
        %v816 = vpop.permute.xlu0 %815
        %v819 = vadd.f32 %v805, %v814
        %v820 = vadd.f32 %v806, %v816
        %s821 = sld [smem:[#allocation3 + $0x29]]
        %v822 = vstv %s821
        %v823 = vmul.f32 %v822, %v744
        %v824 = vmul.f32 %v822, %v745
        %827 = vrot.lane.b32.xlu0 %v823, 122
        %v828 = vpop.permute.xlu0 %827
        %829 = vrot.lane.b32.xlu0 %v824, 122
        %v830 = vpop.permute.xlu0 %829
        %v833 = vadd.f32 %v819, %v828
        %v834 = vadd.f32 %v820, %v830
        %s835 = sld [smem:[#allocation3 + $0x2a]]
        %v836 = vld [vmem:[#allocation2 + $0x6] sm:$0xff]
        %v837 = vld [vmem:[#allocation2 + $0xe] sm:$0xff]
        %v838 = vstv %s835
        %v839 = vmul.f32 %v838, %v836
        %v840 = vmul.f32 %v838, %v837
        %v841 = vadd.f32 %v833, %v839
        %v842 = vadd.f32 %v834, %v840
        %s843 = sld [smem:[#allocation3 + $0x2b]]
        %v844 = vstv %s843
        %v845 = vmul.f32 %v844, %v836
        %v846 = vmul.f32 %v844, %v837
        %849 = vrot.lane.b32.xlu0 %v845, 127
        %v850 = vpop.permute.xlu0 %849
        %851 = vrot.lane.b32.xlu0 %v846, 127
        %v852 = vpop.permute.xlu0 %851
        %v855 = vadd.f32 %v841, %v850
        %v856 = vadd.f32 %v842, %v852
        %s857 = sld [smem:[#allocation3 + $0x2c]]
        %v858 = vstv %s857
        %v859 = vmul.f32 %v858, %v836
        %v860 = vmul.f32 %v858, %v837
        %863 = vrot.lane.b32.xlu0 %v859, 126
        %v864 = vpop.permute.xlu0 %863
        %865 = vrot.lane.b32.xlu0 %v860, 126
        %v866 = vpop.permute.xlu0 %865
        %v869 = vadd.f32 %v855, %v864
        %v870 = vadd.f32 %v856, %v866
        %s871 = sld [smem:[#allocation3 + $0x2d]]
        %v872 = vstv %s871
        %v873 = vmul.f32 %v872, %v836
        %v874 = vmul.f32 %v872, %v837
        %877 = vrot.lane.b32.xlu0 %v873, 125
        %v878 = vpop.permute.xlu0 %877
        %879 = vrot.lane.b32.xlu0 %v874, 125
        %v880 = vpop.permute.xlu0 %879
        %v883 = vadd.f32 %v869, %v878
        %v884 = vadd.f32 %v870, %v880
        %s885 = sld [smem:[#allocation3 + $0x2e]]
        %v886 = vstv %s885
        %v887 = vmul.f32 %v886, %v836
        %v888 = vmul.f32 %v886, %v837
        %891 = vrot.lane.b32.xlu0 %v887, 124
        %v892 = vpop.permute.xlu0 %891
        %893 = vrot.lane.b32.xlu0 %v888, 124
        %v894 = vpop.permute.xlu0 %893
        %v897 = vadd.f32 %v883, %v892
        %v898 = vadd.f32 %v884, %v894
        %s899 = sld [smem:[#allocation3 + $0x2f]]
        %v900 = vstv %s899
        %v901 = vmul.f32 %v900, %v836
        %v902 = vmul.f32 %v900, %v837
        %905 = vrot.lane.b32.xlu0 %v901, 123
        %v906 = vpop.permute.xlu0 %905
        %907 = vrot.lane.b32.xlu0 %v902, 123
        %v908 = vpop.permute.xlu0 %907
        %v911 = vadd.f32 %v897, %v906
        %v912 = vadd.f32 %v898, %v908
        %s913 = sld [smem:[#allocation3 + $0x30]]
        %v914 = vstv %s913
        %v915 = vmul.f32 %v914, %v836
        %v916 = vmul.f32 %v914, %v837
        %919 = vrot.lane.b32.xlu0 %v915, 122
        %v920 = vpop.permute.xlu0 %919
        %921 = vrot.lane.b32.xlu0 %v916, 122
        %v922 = vpop.permute.xlu0 %921
        %v925 = vadd.f32 %v911, %v920
        %v926 = vadd.f32 %v912, %v922
        %s927 = sld [smem:[#allocation3 + $0x31]]
        %v928 = vld [vmem:[%s279] sm:$0xff]
        %v929 = vld [vmem:[%s279 + $0x8] sm:$0xff]
        %v930 = vstv %s927
        %v931 = vmul.f32 %v930, %v928
        %v932 = vmul.f32 %v930, %v929
        %v933 = vadd.f32 %v925, %v931
        %v934 = vadd.f32 %v926, %v932
        %s935 = sld [smem:[#allocation3 + $0x32]]
        %v936 = vstv %s935
        %v937 = vmul.f32 %v936, %v928
        %v938 = vmul.f32 %v936, %v929
        %941 = vrot.lane.b32.xlu0 %v937, 127
        %v942 = vpop.permute.xlu0 %941
        %943 = vrot.lane.b32.xlu0 %v938, 127
        %v944 = vpop.permute.xlu0 %943
        %v947 = vadd.f32 %v933, %v942
        %v948 = vadd.f32 %v934, %v944
        %s949 = sld [smem:[#allocation3 + $0x33]]
        %v950 = vstv %s949
        %v951 = vmul.f32 %v950, %v928
        %v952 = vmul.f32 %v950, %v929
        %955 = vrot.lane.b32.xlu0 %v951, 126
        %v956 = vpop.permute.xlu0 %955
        %957 = vrot.lane.b32.xlu0 %v952, 126
        %v958 = vpop.permute.xlu0 %957
        %v961 = vadd.f32 %v947, %v956
        %v962 = vadd.f32 %v948, %v958
        %s963 = sld [smem:[#allocation3 + $0x34]]
        %v964 = vstv %s963
        %v965 = vmul.f32 %v964, %v928
        %v966 = vmul.f32 %v964, %v929
        %969 = vrot.lane.b32.xlu0 %v965, 125
        %v970 = vpop.permute.xlu0 %969
        %971 = vrot.lane.b32.xlu0 %v966, 125
        %v972 = vpop.permute.xlu0 %971
        %v975 = vadd.f32 %v961, %v970
        %v976 = vadd.f32 %v962, %v972
        %s977 = sld [smem:[#allocation3 + $0x35]]
        %v978 = vstv %s977
        %v979 = vmul.f32 %v978, %v928
        %v980 = vmul.f32 %v978, %v929
        %983 = vrot.lane.b32.xlu0 %v979, 124
        %v984 = vpop.permute.xlu0 %983
        %985 = vrot.lane.b32.xlu0 %v980, 124
        %v986 = vpop.permute.xlu0 %985
        %v989 = vadd.f32 %v975, %v984
        %v990 = vadd.f32 %v976, %v986
        %s991 = sld [smem:[#allocation3 + $0x36]]
        %v992 = vstv %s991
        %v993 = vmul.f32 %v992, %v928
        %v994 = vmul.f32 %v992, %v929
        %997 = vrot.lane.b32.xlu0 %v993, 123
        %v998 = vpop.permute.xlu0 %997
        %999 = vrot.lane.b32.xlu0 %v994, 123
        %v1000 = vpop.permute.xlu0 %999
        %v1003 = vadd.f32 %v989, %v998
        %v1004 = vadd.f32 %v990, %v1000
        %s1005 = sld [smem:[#allocation3 + $0x37]]
        %v1006 = vstv %s1005
        %v1007 = vmul.f32 %v1006, %v928
        %v1008 = vmul.f32 %v1006, %v929
        %1011 = vrot.lane.b32.xlu0 %v1007, 122
        %v1012 = vpop.permute.xlu0 %1011
        %1013 = vrot.lane.b32.xlu0 %v1008, 122
        %v1014 = vpop.permute.xlu0 %1013
        %v1017 = vadd.f32 %v1003, %v1012
        %v1018 = vadd.f32 %v1004, %v1014
        %s1019 = sld [smem:[#allocation3 + $0x38]]
        %v1020 = vld [vmem:[%s279 + $0x1] sm:$0xff]
        %v1021 = vld [vmem:[%s279 + $0x9] sm:$0xff]
        %v1022 = vstv %s1019
        %v1023 = vmul.f32 %v1022, %v1020
        %v1024 = vmul.f32 %v1022, %v1021
        %v1025 = vadd.f32 %v1017, %v1023
        %v1026 = vadd.f32 %v1018, %v1024
        %s1027 = sld [smem:[#allocation3 + $0x39]]
        %v1028 = vstv %s1027
        %v1029 = vmul.f32 %v1028, %v1020
        %v1030 = vmul.f32 %v1028, %v1021
        %1033 = vrot.lane.b32.xlu0 %v1029, 127
        %v1034 = vpop.permute.xlu0 %1033
        %1035 = vrot.lane.b32.xlu0 %v1030, 127
        %v1036 = vpop.permute.xlu0 %1035
        %v1039 = vadd.f32 %v1025, %v1034
        %v1040 = vadd.f32 %v1026, %v1036
        %s1041 = sld [smem:[#allocation3 + $0x3a]]
        %v1042 = vstv %s1041
        %v1043 = vmul.f32 %v1042, %v1020
        %v1044 = vmul.f32 %v1042, %v1021
        %1047 = vrot.lane.b32.xlu0 %v1043, 126
        %v1048 = vpop.permute.xlu0 %1047
        %1049 = vrot.lane.b32.xlu0 %v1044, 126
        %v1050 = vpop.permute.xlu0 %1049
        %v1053 = vadd.f32 %v1039, %v1048
        %v1054 = vadd.f32 %v1040, %v1050
        %s1055 = sld [smem:[#allocation3 + $0x3b]]
        %v1056 = vstv %s1055
        %v1057 = vmul.f32 %v1056, %v1020
        %v1058 = vmul.f32 %v1056, %v1021
        %1061 = vrot.lane.b32.xlu0 %v1057, 125
        %v1062 = vpop.permute.xlu0 %1061
        %1063 = vrot.lane.b32.xlu0 %v1058, 125
        %v1064 = vpop.permute.xlu0 %1063
        %v1067 = vadd.f32 %v1053, %v1062
        %v1068 = vadd.f32 %v1054, %v1064
        %s1069 = sld [smem:[#allocation3 + $0x3c]]
        %v1070 = vstv %s1069
        %v1071 = vmul.f32 %v1070, %v1020
        %v1072 = vmul.f32 %v1070, %v1021
        %1075 = vrot.lane.b32.xlu0 %v1071, 124
        %v1076 = vpop.permute.xlu0 %1075
        %1077 = vrot.lane.b32.xlu0 %v1072, 124
        %v1078 = vpop.permute.xlu0 %1077
        %v1081 = vadd.f32 %v1067, %v1076
        %v1082 = vadd.f32 %v1068, %v1078
        %s1083 = sld [smem:[#allocation3 + $0x3d]]
        %v1084 = vstv %s1083
        %v1085 = vmul.f32 %v1084, %v1020
        %v1086 = vmul.f32 %v1084, %v1021
        %1089 = vrot.lane.b32.xlu0 %v1085, 123
        %v1090 = vpop.permute.xlu0 %1089
        %1091 = vrot.lane.b32.xlu0 %v1086, 123
        %v1092 = vpop.permute.xlu0 %1091
        %v1095 = vadd.f32 %v1081, %v1090
        %v1096 = vadd.f32 %v1082, %v1092
        %s1097 = sld [smem:[#allocation3 + $0x3e]]
        %v1098 = vstv %s1097
        %v1099 = vmul.f32 %v1098, %v1020
        %v1100 = vmul.f32 %v1098, %v1021
        %1103 = vrot.lane.b32.xlu0 %v1099, 122
        %v1104 = vpop.permute.xlu0 %1103
        %1105 = vrot.lane.b32.xlu0 %v1100, 122
        %v1106 = vpop.permute.xlu0 %1105
        %v1109 = vadd.f32 %v1095, %v1104
        %v1110 = vadd.f32 %v1096, %v1106
        %s1111 = sld [smem:[#allocation3 + $0x3f]]
        %v1112 = vld [vmem:[%s279 + $0x2] sm:$0xff]
        %v1113 = vld [vmem:[%s279 + $0xa] sm:$0xff]
        %v1114 = vstv %s1111
        %v1115 = vmul.f32 %v1114, %v1112
        %v1116 = vmul.f32 %v1114, %v1113
        %v1117 = vadd.f32 %v1109, %v1115
        %v1118 = vadd.f32 %v1110, %v1116
        %s1119 = sld [smem:[#allocation3 + $0x40]]
        %v1120 = vstv %s1119
        %v1121 = vmul.f32 %v1120, %v1112
        %v1122 = vmul.f32 %v1120, %v1113
        %1125 = vrot.lane.b32.xlu0 %v1121, 127
        %v1126 = vpop.permute.xlu0 %1125
        %1127 = vrot.lane.b32.xlu0 %v1122, 127
        %v1128 = vpop.permute.xlu0 %1127
        %v1131 = vadd.f32 %v1117, %v1126
        %v1132 = vadd.f32 %v1118, %v1128
        %s1133 = sld [smem:[#allocation3 + $0x41]]
        %v1134 = vstv %s1133
        %v1135 = vmul.f32 %v1134, %v1112
        %v1136 = vmul.f32 %v1134, %v1113
        %1139 = vrot.lane.b32.xlu0 %v1135, 126
        %v1140 = vpop.permute.xlu0 %1139
        %1141 = vrot.lane.b32.xlu0 %v1136, 126
        %v1142 = vpop.permute.xlu0 %1141
        %v1145 = vadd.f32 %v1131, %v1140
        %v1146 = vadd.f32 %v1132, %v1142
        %s1147 = sld [smem:[#allocation3 + $0x42]]
        %v1148 = vstv %s1147
        %v1149 = vmul.f32 %v1148, %v1112
        %v1150 = vmul.f32 %v1148, %v1113
        %1153 = vrot.lane.b32.xlu0 %v1149, 125
        %v1154 = vpop.permute.xlu0 %1153
        %1155 = vrot.lane.b32.xlu0 %v1150, 125
        %v1156 = vpop.permute.xlu0 %1155
        %v1159 = vadd.f32 %v1145, %v1154
        %v1160 = vadd.f32 %v1146, %v1156
        %s1161 = sld [smem:[#allocation3 + $0x43]]
        %v1162 = vstv %s1161
        %v1163 = vmul.f32 %v1162, %v1112
        %v1164 = vmul.f32 %v1162, %v1113
        %1167 = vrot.lane.b32.xlu0 %v1163, 124
        %v1168 = vpop.permute.xlu0 %1167
        %1169 = vrot.lane.b32.xlu0 %v1164, 124
        %v1170 = vpop.permute.xlu0 %1169
        %v1173 = vadd.f32 %v1159, %v1168
        %v1174 = vadd.f32 %v1160, %v1170
        %s1175 = sld [smem:[#allocation3 + $0x44]]
        %v1176 = vstv %s1175
        %v1177 = vmul.f32 %v1176, %v1112
        %v1178 = vmul.f32 %v1176, %v1113
        %1181 = vrot.lane.b32.xlu0 %v1177, 123
        %v1182 = vpop.permute.xlu0 %1181
        %1183 = vrot.lane.b32.xlu0 %v1178, 123
        %v1184 = vpop.permute.xlu0 %1183
        %v1187 = vadd.f32 %v1173, %v1182
        %v1188 = vadd.f32 %v1174, %v1184
        %s1189 = sld [smem:[#allocation3 + $0x45]]
        %v1190 = vstv %s1189
        %v1191 = vmul.f32 %v1190, %v1112
        %v1192 = vmul.f32 %v1190, %v1113
        %1195 = vrot.lane.b32.xlu0 %v1191, 122
        %v1196 = vpop.permute.xlu0 %1195
        %1197 = vrot.lane.b32.xlu0 %v1192, 122
        %v1198 = vpop.permute.xlu0 %1197
        %v1201 = vadd.f32 %v1187, %v1196
        %v1202 = vadd.f32 %v1188, %v1198
        %s1203 = sld [smem:[#allocation3 + $0x46]]
        %v1204 = vld [vmem:[%s279 + $0x3] sm:$0xff]
        %v1205 = vld [vmem:[%s279 + $0xb] sm:$0xff]
        %v1206 = vstv %s1203
        %v1207 = vmul.f32 %v1206, %v1204
        %v1208 = vmul.f32 %v1206, %v1205
        %v1209 = vadd.f32 %v1201, %v1207
        %v1210 = vadd.f32 %v1202, %v1208
        %s1211 = sld [smem:[#allocation3 + $0x47]]
        %v1212 = vstv %s1211
        %v1213 = vmul.f32 %v1212, %v1204
        %v1214 = vmul.f32 %v1212, %v1205
        %1217 = vrot.lane.b32.xlu0 %v1213, 127
        %v1218 = vpop.permute.xlu0 %1217
        %1219 = vrot.lane.b32.xlu0 %v1214, 127
        %v1220 = vpop.permute.xlu0 %1219
        %v1223 = vadd.f32 %v1209, %v1218
        %v1224 = vadd.f32 %v1210, %v1220
        %s1225 = sld [smem:[#allocation3 + $0x48]]
        %v1226 = vstv %s1225
        %v1227 = vmul.f32 %v1226, %v1204
        %v1228 = vmul.f32 %v1226, %v1205
        %1231 = vrot.lane.b32.xlu0 %v1227, 126
        %v1232 = vpop.permute.xlu0 %1231
        %1233 = vrot.lane.b32.xlu0 %v1228, 126
        %v1234 = vpop.permute.xlu0 %1233
        %v1237 = vadd.f32 %v1223, %v1232
        %v1238 = vadd.f32 %v1224, %v1234
        %s1239 = sld [smem:[#allocation3 + $0x49]]
        %v1240 = vstv %s1239
        %v1241 = vmul.f32 %v1240, %v1204
        %v1242 = vmul.f32 %v1240, %v1205
        %1245 = vrot.lane.b32.xlu0 %v1241, 125
        %v1246 = vpop.permute.xlu0 %1245
        %1247 = vrot.lane.b32.xlu0 %v1242, 125
        %v1248 = vpop.permute.xlu0 %1247
        %v1251 = vadd.f32 %v1237, %v1246
        %v1252 = vadd.f32 %v1238, %v1248
        %s1253 = sld [smem:[#allocation3 + $0x4a]]
        %v1254 = vstv %s1253
        %v1255 = vmul.f32 %v1254, %v1204
        %v1256 = vmul.f32 %v1254, %v1205
        %1259 = vrot.lane.b32.xlu0 %v1255, 124
        %v1260 = vpop.permute.xlu0 %1259
        %1261 = vrot.lane.b32.xlu0 %v1256, 124
        %v1262 = vpop.permute.xlu0 %1261
        %v1265 = vadd.f32 %v1251, %v1260
        %v1266 = vadd.f32 %v1252, %v1262
        %s1267 = sld [smem:[#allocation3 + $0x4b]]
        %v1268 = vstv %s1267
        %v1269 = vmul.f32 %v1268, %v1204
        %v1270 = vmul.f32 %v1268, %v1205
        %1273 = vrot.lane.b32.xlu0 %v1269, 123
        %v1274 = vpop.permute.xlu0 %1273
        %1275 = vrot.lane.b32.xlu0 %v1270, 123
        %v1276 = vpop.permute.xlu0 %1275
        %v1279 = vadd.f32 %v1265, %v1274
        %v1280 = vadd.f32 %v1266, %v1276
        %s1281 = sld [smem:[#allocation3 + $0x4c]]
        %v1282 = vstv %s1281
        %v1283 = vmul.f32 %v1282, %v1204
        %v1284 = vmul.f32 %v1282, %v1205
        %1287 = vrot.lane.b32.xlu0 %v1283, 122
        %v1288 = vpop.permute.xlu0 %1287
        %1289 = vrot.lane.b32.xlu0 %v1284, 122
        %v1290 = vpop.permute.xlu0 %1289
        %v1293 = vadd.f32 %v1279, %v1288
        %v1294 = vadd.f32 %v1280, %v1290
        %s1295 = sld [smem:[#allocation3 + $0x4d]]
        %v1296 = vld [vmem:[%s279 + $0x4] sm:$0xff]
        %v1297 = vld [vmem:[%s279 + $0xc] sm:$0xff]
        %v1298 = vstv %s1295
        %v1299 = vmul.f32 %v1298, %v1296
        %v1300 = vmul.f32 %v1298, %v1297
        %v1301 = vadd.f32 %v1293, %v1299
        %v1302 = vadd.f32 %v1294, %v1300
        %s1303 = sld [smem:[#allocation3 + $0x4e]]
        %v1304 = vstv %s1303
        %v1305 = vmul.f32 %v1304, %v1296
        %v1306 = vmul.f32 %v1304, %v1297
        %1309 = vrot.lane.b32.xlu0 %v1305, 127
        %v1310 = vpop.permute.xlu0 %1309
        %1311 = vrot.lane.b32.xlu0 %v1306, 127
        %v1312 = vpop.permute.xlu0 %1311
        %v1315 = vadd.f32 %v1301, %v1310
        %v1316 = vadd.f32 %v1302, %v1312
        %s1317 = sld [smem:[#allocation3 + $0x4f]]
        %v1318 = vstv %s1317
        %v1319 = vmul.f32 %v1318, %v1296
        %v1320 = vmul.f32 %v1318, %v1297
        %1323 = vrot.lane.b32.xlu0 %v1319, 126
        %v1324 = vpop.permute.xlu0 %1323
        %1325 = vrot.lane.b32.xlu0 %v1320, 126
        %v1326 = vpop.permute.xlu0 %1325
        %v1329 = vadd.f32 %v1315, %v1324
        %v1330 = vadd.f32 %v1316, %v1326
        %s1331 = sld [smem:[#allocation3 + $0x50]]
        %v1332 = vstv %s1331
        %v1333 = vmul.f32 %v1332, %v1296
        %v1334 = vmul.f32 %v1332, %v1297
        %1337 = vrot.lane.b32.xlu0 %v1333, 125
        %v1338 = vpop.permute.xlu0 %1337
        %1339 = vrot.lane.b32.xlu0 %v1334, 125
        %v1340 = vpop.permute.xlu0 %1339
        %v1343 = vadd.f32 %v1329, %v1338
        %v1344 = vadd.f32 %v1330, %v1340
        %s1345 = sld [smem:[#allocation3 + $0x51]]
        %v1346 = vstv %s1345
        %v1347 = vmul.f32 %v1346, %v1296
        %v1348 = vmul.f32 %v1346, %v1297
        %1351 = vrot.lane.b32.xlu0 %v1347, 124
        %v1352 = vpop.permute.xlu0 %1351
        %1353 = vrot.lane.b32.xlu0 %v1348, 124
        %v1354 = vpop.permute.xlu0 %1353
        %v1357 = vadd.f32 %v1343, %v1352
        %v1358 = vadd.f32 %v1344, %v1354
        %s1359 = sld [smem:[#allocation3 + $0x52]]
        %v1360 = vstv %s1359
        %v1361 = vmul.f32 %v1360, %v1296
        %v1362 = vmul.f32 %v1360, %v1297
        %1365 = vrot.lane.b32.xlu0 %v1361, 123
        %v1366 = vpop.permute.xlu0 %1365
        %1367 = vrot.lane.b32.xlu0 %v1362, 123
        %v1368 = vpop.permute.xlu0 %1367
        %v1371 = vadd.f32 %v1357, %v1366
        %v1372 = vadd.f32 %v1358, %v1368
        %s1373 = sld [smem:[#allocation3 + $0x53]]
        %v1374 = vstv %s1373
        %v1375 = vmul.f32 %v1374, %v1296
        %v1376 = vmul.f32 %v1374, %v1297
        %1379 = vrot.lane.b32.xlu0 %v1375, 122
        %v1380 = vpop.permute.xlu0 %1379
        %1381 = vrot.lane.b32.xlu0 %v1376, 122
        %v1382 = vpop.permute.xlu0 %1381
        %v1385 = vadd.f32 %v1371, %v1380
        %v1386 = vadd.f32 %v1372, %v1382
        %s1387 = sld [smem:[#allocation3 + $0x54]]
        %v1388 = vld [vmem:[%s279 + $0x5] sm:$0xff]
        %v1389 = vld [vmem:[%s279 + $0xd] sm:$0xff]
        %v1390 = vstv %s1387
        %v1391 = vmul.f32 %v1390, %v1388
        %v1392 = vmul.f32 %v1390, %v1389
        %v1393 = vadd.f32 %v1385, %v1391
        %v1394 = vadd.f32 %v1386, %v1392
        %s1395 = sld [smem:[#allocation3 + $0x55]]
        %v1396 = vstv %s1395
        %v1397 = vmul.f32 %v1396, %v1388
        %v1398 = vmul.f32 %v1396, %v1389
        %1401 = vrot.lane.b32.xlu0 %v1397, 127
        %v1402 = vpop.permute.xlu0 %1401
        %1403 = vrot.lane.b32.xlu0 %v1398, 127
        %v1404 = vpop.permute.xlu0 %1403
        %v1407 = vadd.f32 %v1393, %v1402
        %v1408 = vadd.f32 %v1394, %v1404
        %s1409 = sld [smem:[#allocation3 + $0x56]]
        %v1410 = vstv %s1409
        %v1411 = vmul.f32 %v1410, %v1388
        %v1412 = vmul.f32 %v1410, %v1389
        %1415 = vrot.lane.b32.xlu0 %v1411, 126
        %v1416 = vpop.permute.xlu0 %1415
        %1417 = vrot.lane.b32.xlu0 %v1412, 126
        %v1418 = vpop.permute.xlu0 %1417
        %v1421 = vadd.f32 %v1407, %v1416
        %v1422 = vadd.f32 %v1408, %v1418
        %s1423 = sld [smem:[#allocation3 + $0x57]]
        %v1424 = vstv %s1423
        %v1425 = vmul.f32 %v1424, %v1388
        %v1426 = vmul.f32 %v1424, %v1389
        %1429 = vrot.lane.b32.xlu0 %v1425, 125
        %v1430 = vpop.permute.xlu0 %1429
        %1431 = vrot.lane.b32.xlu0 %v1426, 125
        %v1432 = vpop.permute.xlu0 %1431
        %v1435 = vadd.f32 %v1421, %v1430
        %v1436 = vadd.f32 %v1422, %v1432
        %s1437 = sld [smem:[#allocation3 + $0x58]]
        %v1438 = vstv %s1437
        %v1439 = vmul.f32 %v1438, %v1388
        %v1440 = vmul.f32 %v1438, %v1389
        %1443 = vrot.lane.b32.xlu0 %v1439, 124
        %v1444 = vpop.permute.xlu0 %1443
        %1445 = vrot.lane.b32.xlu0 %v1440, 124
        %v1446 = vpop.permute.xlu0 %1445
        %v1449 = vadd.f32 %v1435, %v1444
        %v1450 = vadd.f32 %v1436, %v1446
        %s1451 = sld [smem:[#allocation3 + $0x59]]
        %v1452 = vstv %s1451
        %v1453 = vmul.f32 %v1452, %v1388
        %v1454 = vmul.f32 %v1452, %v1389
        %1457 = vrot.lane.b32.xlu0 %v1453, 123
        %v1458 = vpop.permute.xlu0 %1457
        %1459 = vrot.lane.b32.xlu0 %v1454, 123
        %v1460 = vpop.permute.xlu0 %1459
        %v1463 = vadd.f32 %v1449, %v1458
        %v1464 = vadd.f32 %v1450, %v1460
        %s1465 = sld [smem:[#allocation3 + $0x5a]]
        %v1466 = vstv %s1465
        %v1467 = vmul.f32 %v1466, %v1388
        %v1468 = vmul.f32 %v1466, %v1389
        %1471 = vrot.lane.b32.xlu0 %v1467, 122
        %v1472 = vpop.permute.xlu0 %1471
        %1473 = vrot.lane.b32.xlu0 %v1468, 122
        %v1474 = vpop.permute.xlu0 %1473
        %v1477 = vadd.f32 %v1463, %v1472
        %v1478 = vadd.f32 %v1464, %v1474
        %s1479 = sld [smem:[#allocation3 + $0x5b]]
        %v1480 = vld [vmem:[%s279 + $0x6] sm:$0xff]
        %v1481 = vld [vmem:[%s279 + $0xe] sm:$0xff]
        %v1482 = vstv %s1479
        %v1483 = vmul.f32 %v1482, %v1480
        %v1484 = vmul.f32 %v1482, %v1481
        %v1485 = vadd.f32 %v1477, %v1483
        %v1486 = vadd.f32 %v1478, %v1484
        %s1487 = sld [smem:[#allocation3 + $0x5c]]
        %v1488 = vstv %s1487
        %v1489 = vmul.f32 %v1488, %v1480
        %v1490 = vmul.f32 %v1488, %v1481
        %1493 = vrot.lane.b32.xlu0 %v1489, 127
        %v1494 = vpop.permute.xlu0 %1493
        %1495 = vrot.lane.b32.xlu0 %v1490, 127
        %v1496 = vpop.permute.xlu0 %1495
        %v1499 = vadd.f32 %v1485, %v1494
        %v1500 = vadd.f32 %v1486, %v1496
        %s1501 = sld [smem:[#allocation3 + $0x5d]]
        %v1502 = vstv %s1501
        %v1503 = vmul.f32 %v1502, %v1480
        %v1504 = vmul.f32 %v1502, %v1481
        %1507 = vrot.lane.b32.xlu0 %v1503, 126
        %v1508 = vpop.permute.xlu0 %1507
        %1509 = vrot.lane.b32.xlu0 %v1504, 126
        %v1510 = vpop.permute.xlu0 %1509
        %v1513 = vadd.f32 %v1499, %v1508
        %v1514 = vadd.f32 %v1500, %v1510
        %s1515 = sld [smem:[#allocation3 + $0x5e]]
        %v1516 = vstv %s1515
        %v1517 = vmul.f32 %v1516, %v1480
        %v1518 = vmul.f32 %v1516, %v1481
        %1521 = vrot.lane.b32.xlu0 %v1517, 125
        %v1522 = vpop.permute.xlu0 %1521
        %1523 = vrot.lane.b32.xlu0 %v1518, 125
        %v1524 = vpop.permute.xlu0 %1523
        %v1527 = vadd.f32 %v1513, %v1522
        %v1528 = vadd.f32 %v1514, %v1524
        %s1529 = sld [smem:[#allocation3 + $0x5f]]
        %v1530 = vstv %s1529
        %v1531 = vmul.f32 %v1530, %v1480
        %v1532 = vmul.f32 %v1530, %v1481
        %1535 = vrot.lane.b32.xlu0 %v1531, 124
        %v1536 = vpop.permute.xlu0 %1535
        %1537 = vrot.lane.b32.xlu0 %v1532, 124
        %v1538 = vpop.permute.xlu0 %1537
        %v1541 = vadd.f32 %v1527, %v1536
        %v1542 = vadd.f32 %v1528, %v1538
        %s1543 = sld [smem:[#allocation3 + $0x60]]
        %v1544 = vstv %s1543
        %v1545 = vmul.f32 %v1544, %v1480
        %v1546 = vmul.f32 %v1544, %v1481
        %1549 = vrot.lane.b32.xlu0 %v1545, 123
        %v1550 = vpop.permute.xlu0 %1549
        %1551 = vrot.lane.b32.xlu0 %v1546, 123
        %v1552 = vpop.permute.xlu0 %1551
        %v1555 = vadd.f32 %v1541, %v1550
        %v1556 = vadd.f32 %v1542, %v1552
        %s1557 = sld [smem:[#allocation3 + $0x61]]
        %v1558 = vstv %s1557
        %v1559 = vmul.f32 %v1558, %v1480
        %v1560 = vmul.f32 %v1558, %v1481
        %1563 = vrot.lane.b32.xlu0 %v1559, 122
        %v1564 = vpop.permute.xlu0 %1563
        %1565 = vrot.lane.b32.xlu0 %v1560, 122
        %v1566 = vpop.permute.xlu0 %1565
        %v1569 = vadd.f32 %v1555, %v1564
        %v1570 = vadd.f32 %v1556, %v1566
        %v1571 = vxor.u32 %v1569, 2147483648
        %v1572 = vxor.u32 %v1570, 2147483648
        %v1573 = vmul.f32 %v1571, 1.442695
        %v1574 = vpow.pop %v1573
        %v1575 = vmul.f32 %v1572, 1.442695
        %v1576 = vpow.pop %v1575
        %v1577 = vadd.f32 %v1574, 1.0
        %v1578 = vadd.f32 %v1576, 1.0
        %v1579 = vrcp.pop %v1577
        %v1580 = vmul.f32 1.0, %v1579
        %v1581 = vrcp.pop %v1578
        %v1582 = vmul.f32 1.0, %v1581
        %v1583 = vld [vmem:[%s155 + $0x3] sm:$0xff]
        %v1584 = vld [vmem:[%s155 + $0xb] sm:$0xff]
        %v1585 = vld [vmem:[%s155 + $0x1b] sm:$0xff]
        %v1586 = vld [vmem:[%s155 + $0x23] sm:$0xff]
        %v1587 = vld [vmem:[%s155 + $0x33] sm:$0xff]
        %v1588 = vld [vmem:[%s155 + $0x3b] sm:$0xff]
        %v1589 = vld [vmem:[%s155 + $0x4b] sm:$0xff]
        %v1590 = vld [vmem:[%s155 + $0x53] sm:$0xff]
        %v1591 = vld [vmem:[%s155 + $0x63] sm:$0xff]
        %v1592 = vld [vmem:[%s155 + $0x6b] sm:$0xff]
        %v1593 = vld [vmem:[%s155 + $0x7b] sm:$0xff]
        %v1594 = vld [vmem:[%s155 + $0x83] sm:$0xff]
        %v1595 = vld [vmem:[%s155 + $0x93] sm:$0xff]
        %v1596 = vld [vmem:[%s155 + $0x9b] sm:$0xff]
        %v1597 = vld [vmem:[%s155 + $0xab] sm:$0xff]
        %v1598 = vld [vmem:[%s155 + $0xb3] sm:$0xff]
        %1601 = vrot.lane.b32.xlu0 %v1580, 3
        %v1602 = vpop.permute.xlu0 %1601
        %1603 = vrot.lane.b32.xlu0 %v1582, 3
        %v1604 = vpop.permute.xlu0 %1603
        %v1607 = vmul.f32 %v1583, %v1602
        %v1608 = vmul.f32 %v1584, %v1604
        %v1609 = vmul.f32 %v1585, %v1602
        %v1610 = vmul.f32 %v1586, %v1604
        %v1611 = vmul.f32 %v1587, %v1602
        %v1612 = vmul.f32 %v1588, %v1604
        %v1613 = vmul.f32 %v1589, %v1602
        %v1614 = vmul.f32 %v1590, %v1604
        %v1615 = vmul.f32 %v1591, %v1602
        %v1616 = vmul.f32 %v1592, %v1604
        %v1617 = vmul.f32 %v1593, %v1602
        %v1618 = vmul.f32 %v1594, %v1604
        %v1619 = vmul.f32 %v1595, %v1602
        %v1620 = vmul.f32 %v1596, %v1604
        %v1621 = vmul.f32 %v1597, %v1602
        %v1622 = vmul.f32 %v1598, %v1604
        %1639 = vrot.lane.b32.xlu0 %v1607, 125
        %v1640 = vpop.permute.xlu0 %1639
        %1641 = vrot.lane.b32.xlu0 %v1608, 125
        %v1642 = vpop.permute.xlu0 %1641
        %1643 = vrot.lane.b32.xlu0 %v1609, 125
        %v1644 = vpop.permute.xlu0 %1643
        %1645 = vrot.lane.b32.xlu0 %v1610, 125
        %v1646 = vpop.permute.xlu0 %1645
        %1647 = vrot.lane.b32.xlu0 %v1611, 125
        %v1648 = vpop.permute.xlu0 %1647
        %1649 = vrot.lane.b32.xlu0 %v1612, 125
        %v1650 = vpop.permute.xlu0 %1649
        %1651 = vrot.lane.b32.xlu0 %v1613, 125
        %v1652 = vpop.permute.xlu0 %1651
        %1653 = vrot.lane.b32.xlu0 %v1614, 125
        %v1654 = vpop.permute.xlu0 %1653
        %1655 = vrot.lane.b32.xlu0 %v1615, 125
        %v1656 = vpop.permute.xlu0 %1655
        %1657 = vrot.lane.b32.xlu0 %v1616, 125
        %v1658 = vpop.permute.xlu0 %1657
        %1659 = vrot.lane.b32.xlu0 %v1617, 125
        %v1660 = vpop.permute.xlu0 %1659
        %1661 = vrot.lane.b32.xlu0 %v1618, 125
        %v1662 = vpop.permute.xlu0 %1661
        %1663 = vrot.lane.b32.xlu0 %v1619, 125
        %v1664 = vpop.permute.xlu0 %1663
        %1665 = vrot.lane.b32.xlu0 %v1620, 125
        %v1666 = vpop.permute.xlu0 %1665
        %1667 = vrot.lane.b32.xlu0 %v1621, 125
        %v1668 = vpop.permute.xlu0 %1667
        %1669 = vrot.lane.b32.xlu0 %v1622, 125
        %v1670 = vpop.permute.xlu0 %1669
        %vm1687 = vcmask 130048
        %1688 = vst.msk [vmem:[%s150] sm:$0xff] %vm1687, %v1640
        %1689 = vst.msk [vmem:[%s150 + $0x8] sm:$0xff] %vm1687, %v1642
        %1690 = vst.msk [vmem:[%s150 + $0x10] sm:$0xff] %vm1687, %v1644
        %1691 = vst.msk [vmem:[%s150 + $0x18] sm:$0xff] %vm1687, %v1646
        %1692 = vst.msk [vmem:[%s150 + $0x20] sm:$0xff] %vm1687, %v1648
        %1693 = vst.msk [vmem:[%s150 + $0x28] sm:$0xff] %vm1687, %v1650
        %1694 = vst.msk [vmem:[%s150 + $0x30] sm:$0xff] %vm1687, %v1652
        %1695 = vst.msk [vmem:[%s150 + $0x38] sm:$0xff] %vm1687, %v1654
        %1696 = vst.msk [vmem:[%s150 + $0x40] sm:$0xff] %vm1687, %v1656
        %1697 = vst.msk [vmem:[%s150 + $0x48] sm:$0xff] %vm1687, %v1658
        %1698 = vst.msk [vmem:[%s150 + $0x50] sm:$0xff] %vm1687, %v1660
        %1699 = vst.msk [vmem:[%s150 + $0x58] sm:$0xff] %vm1687, %v1662
        %1700 = vst.msk [vmem:[%s150 + $0x60] sm:$0xff] %vm1687, %v1664
        %1701 = vst.msk [vmem:[%s150 + $0x68] sm:$0xff] %vm1687, %v1666
        %1702 = vst.msk [vmem:[%s150 + $0x70] sm:$0xff] %vm1687, %v1668
        %1703 = vst.msk [vmem:[%s150 + $0x78] sm:$0xff] %vm1687, %v1670
        %s1704 = sand.u32 %s72, 1
        %s1705 = scalar_lea.sflag [#allocation4], %s1704
        %s1706 = sand.u32 %s72, 1
        %s1707 = smul.addr %s1706, 128
        %s1708 = scalar_lea.vmem [#allocation6], %s1707
        // Predicated region
        $region33: #{spatial_attention.1} parent=27 // pred_check
          %p1709 = pneg %p82
        $region34: #{spatial_attention.1} parent=27 // pred_check_branch
          %1711 = sbr.rel (%p1709) target = $region36
        $region35: #{spatial_attention.1} parent=27 // pred_region
          %s1713 = ssub.s32 2048, 2048
          %1714 = vsyncadd %s1705, %s1713
          %s1715 = smul.addr %s17, 16
          %s1716 = smul.addr %s1715, 128
          %s1717 = scalar_lea.hbm %s2, %s1716
          %s1718 = sshll.u32 %s1708, 4
          %s1719 = int_to_ptr.vmem [resolvable:$true] %s1718
          %1724 = dma.vmem_to_hbm [thread:$0]  %s1719, 2048, %s1717, %s1705, 128, 128, 8
        $region36: #{spatial_attention.1} parent=27 // pred_fallthru
          _
      $region28: #{spatial_attention.1} parent=5 // pred_fallthru
        _
      %p1725 = scmp.le.s32.totalorder 2, %s12
      // Predicated region
      $region37: #{spatial_attention.1} parent=5 // pred_check
        %p1726 = pneg %p1725
      $region38: #{spatial_attention.1} parent=5 // pred_check_branch
        %1728 = sbr.rel (%p1726) target = $region40
      $region39: #{spatial_attention.1} parent=5 // pred_region
        %s1729 = ssub.s32 %s12, 2
        // Predicated region
        $region41: #{spatial_attention.1} parent=39 // pred_check
          %p1730 = pneg %p88
        $region42: #{spatial_attention.1} parent=39 // pred_check_branch
          %1732 = sbr.rel (%p1730) target = $region44
        $region43: #{spatial_attention.1} parent=39 // pred_region
          %s1733 = sand.u32 %s73, 1
          %s1734 = scalar_lea.sflag [#allocation4], %s1733
          %s1735 = sand.u32 %s73, 1
          %s1736 = smul.addr %s1735, 128
          %s1737 = scalar_lea.vmem [#allocation6], %s1736
          %1738 = dma.done %s1734, 2048
        $region44: #{spatial_attention.1} parent=39 // pred_fallthru
          _
      $region40: #{spatial_attention.1} parent=5 // pred_fallthru
        _
    $region6: #{spatial_attention.1} parent=1 // loop_footer
      %s16 = sadd.s32 1, %s12
    $region7: #{spatial_attention.1} parent=1 // loop_footer_branch
      %11 = sbr.rel target = $region3
    $region8: #{spatial_attention.1} parent=1 // loop_exit
      _
    %1739 = vsyncpa [#allocation4], 1
    %s1740 = scalar_lea.sflag [#allocation4], 1
    %1741 = vsyncpa %s1740, 1
    %1742 = vsyncpa [#allocation5], 1
    %s1743 = scalar_lea.sflag [#allocation5], 1
    %1744 = vsyncpa %s1743, 1

</llo_original>
